<compile_context>
chip_gen: v7x
topology: tpu7x:2x2x1
jax: 0.10.0
libtpu: 0.0.40
codegen_flags: <defaults>
</compile_context>

<pallas_src>
import jax
import jax.numpy as jnp
from jax.experimental import pallas as pl
from jax.experimental.pallas import tpu as pltpu


def _round_up(x, m):
    return ((x + m - 1) // m) * m


def _pad_to(a, shape):
    return jnp.pad(a, [(0, t - s) for s, t in zip(a.shape, shape)])


def _vmem_budget_bytes():
    """Generation-aware VMEM budget (leave headroom for compiler scratch)."""
    cap = None
    try:
        cap = getattr(pltpu.get_tpu_info(), "vmem_capacity_bytes", None)
    except Exception:
        cap = None
    if not cap:
        cap = 64 * 2**20          # conservative fallback: fits every generation (v7x)
    return int(min(cap * 0.85, cap - 4 * 2**20))


def _make_kernel(adj_resident, BR, BK):
    """Grid = (num_layers, row_blocks, k_blocks); k innermost (accumulator axis)."""

    def kernel(init_ref, adj_ref,
               w_conv_ref, b_conv_ref,
               wg_self_ref, wg_conv_ref, bg_ref,
               w_dec_ref, b_dec_ref,
               o_ref,
               self_ref, conv_ref, sup_ref, acc_ref,
               *adj_scratch):
        l = pl.program_id(0)          # layer (outermost, sequential)
        r = pl.program_id(1)          # adj row block
        k = pl.program_id(2)          # adj contraction block
        num_k = pl.num_programs(2)

        ks = pl.multiple_of(k * BK, BK)
        rs = pl.multiple_of(r * BR, BR)

        if adj_resident:
            adj_vmem, adj_sem = adj_scratch
            # One-time HBM -> VMEM copy of the whole padded adjacency; every later
            # layer reuses it (removes the L-fold HBM re-read of the NP^2 matrix).
            @pl.when((l == 0) & (r == 0) & (k == 0))
            def _():
                cp = pltpu.make_async_copy(adj_ref, adj_vmem, adj_sem)
                cp.start()
                cp.wait()

        # Layer-0 state init (encoder already applied outside): copy this k-slice of
        # init_x into the resident node state.  r == 0 sweeps all k slices, so the
        # state is fully initialized before any row-block epilogue reads it.
        @pl.when((l == 0) & (r == 0))
        def _():
            init_slice = init_ref[pl.ds(ks, BK), :]
            self_ref[pl.ds(ks, BK), :] = init_slice
            conv_ref[pl.ds(ks, BK), :] = init_slice.astype(jnp.bfloat16)

        # Per-layer support, distributed over k so it overlaps with the adj stream
        # instead of forming a serial layer-boundary bubble:
        #   sup[ks:ks+BK] = conv[ks:ks+BK] @ W_l   (bf16 MXU, f32 accumulate)
        @pl.when(r == 0)
        def _():
            sup_ref[pl.ds(ks, BK), :] = jnp.dot(
                conv_ref[pl.ds(ks, BK), :], w_conv_ref[0],
                preferred_element_type=jnp.float32).astype(jnp.bfloat16)

        # k-axis accumulator for adj[r, :] @ support.
        @pl.when(k == 0)
        def _():
            acc_ref[...] = jnp.zeros_like(acc_ref)

        if adj_resident:
            adj_tile = adj_vmem[pl.ds(rs, BR), pl.ds(ks, BK)]
        else:
            adj_tile = adj_ref[...]
        acc_ref[...] += jnp.dot(adj_tile, sup_ref[pl.ds(ks, BK), :],
                                preferred_element_type=jnp.float32)

        # Row-block epilogue: GCN bias, convex gate, state update, fused decoder.
        @pl.when(k == num_k - 1)
        def _():
            rows = pl.ds(rs, BR)
            conv_new = acc_ref[...] + b_conv_ref[0]            # [BR, HP] f32
            self_old = self_ref[rows, :]                       # [BR, HP] f32

            # Convex gate off the MXU: sigmoid(<self, wg_s> + <conv, wg_c> + b)
            # = VPU multiply + one XLU lane reduction.
            g = jnp.sum(self_old * wg_self_ref[...] + conv_new * wg_conv_ref[...],
                        axis=-1, keepdims=True) + bg_ref[...]
            a = jax.nn.sigmoid(g)                              # [BR, 1]
            self_new = conv_new + a * (self_old - conv_new)    # convex combination

            self_ref[rows, :] = self_new
            conv_ref[rows, :] = conv_new.astype(jnp.bfloat16)

            # Decode into the (BR, OP) tiled output block every layer; `l` is the
            # outermost sequential grid axis, so only the last layer's writeback
            # survives in HBM (earlier ones cost (L-1)*NP*OP*4 bytes -- negligible
            # vs the adjacency stream).
            o_ref[...] = (jnp.dot(self_new.astype(jnp.bfloat16), w_dec_ref[...],
                                  preferred_element_type=jnp.float32)
                          + b_dec_ref[...])

    return kernel


def cagnn_forward(x, adj, params, *, block_r=512, block_k=1024, adj_mode="auto"):
    """adj_mode: 'auto' (resident adj when it fits VMEM) | 'resident' | 'stream'."""
    N, in_c = x.shape
    hid = params["w_enc"].shape[1]
    out_c = params["w_dec"].shape[1]
    num_layers = params["w_conv"].shape[0]

    assert block_r % 8 == 0 and block_k % 128 == 0, "block_r %8, block_k %128 required"

    f32, bf16 = jnp.float32, jnp.bfloat16

    # Channel padding: lane-dense vregs / unmasked stores.  Hidden widths > 128 are
    # aligned to 256 so v6e/v7x's 2x256^2 MXUs are fully fed (128 suffices on v5e).
    HP = _round_up(hid, 256 if hid > 128 else 128)
    OP = _round_up(out_c, 128)

    # Node padding: force compatible tiles (one divides the other) so NP is padded
    # to max(BR, BK), not lcm -- adj traffic scales with NP^2.
    n_lane = _round_up(N, 128)
    BR = min(block_r, n_lane)
    BK = min(block_k, n_lane)
    if BR <= BK:
        BK = _round_up(BK, BR)
    else:
        BR = _round_up(BR, BK)
    NP = _round_up(N, max(BR, BK))

    budget = _vmem_budget_bytes()

    def _vmem_estimate(adj_bytes):
        b = NP * HP * 4 + 2 * NP * HP * 2 + BR * HP * 4     # self(f32), conv+sup(bf16), acc
        b += 2 * NP * HP * 4                                # init_x resident (dbl-buffered)
        b += 2 * (HP * HP * 2 + HP * 4)                     # w_conv[l], b_conv[l]
        b += 2 * (2 * HP * 4 + 4)                           # gate params
        b += 2 * (HP * OP * 2 + OP * 4)                     # decoder
        b += 2 * BR * OP * 4                                # output row block
        return b + adj_bytes

    if adj_mode == "resident":
        use_resident = True
    elif adj_mode == "stream":
        use_resident = False
    else:
        use_resident = _vmem_estimate(NP * NP * 2) <= int(0.9 * budget)

    if use_resident:
        BK = NP                  # single k step: (BR, NP) @ (NP, HP) per row block
    R, K = NP // BR, NP // BK

    # Encoder hoisted to plain XLA (removes the in-kernel cold-start bubble and frees
    # x / W_enc from resident VMEM).  bf16 matmul, f32 accumulate -- same as the MXU
    # path inside the kernel.  Padded rows stay exactly zero.
    init_x = jnp.maximum(
        jnp.dot(x.astype(bf16), params["w_enc"].astype(bf16),
                preferred_element_type=f32) + params["b_enc"], 0.0)
    init_p = _pad_to(init_x, (NP, HP)).astype(f32)

    adj_p   = _pad_to(adj, (NP, NP)).astype(bf16)
    w_conv  = _pad_to(params["w_conv"], (num_layers, HP, HP)).astype(bf16)
    b_conv  = _pad_to(params["b_conv"], (num_layers, 1, HP)).astype(f32)
    wg_self = _pad_to(params["wg_self"].T, (1, HP)).astype(f32)
    wg_conv = _pad_to(params["wg_conv"].T, (1, HP)).astype(f32)
    b_gate  = params["b_gate"].astype(f32).reshape(1, 1)
    w_dec   = _pad_to(params["w_dec"], (HP, OP)).astype(bf16)
    b_dec   = _pad_to(params["b_dec"], (1, OP)).astype(f32)

    def _resident_spec(shape):
        nd = len(shape)
        return pl.BlockSpec(shape, lambda l, r, k, _nd=nd: (0,) * _nd)

    if use_resident:
        adj_spec = pl.BlockSpec(memory_space=pl.ANY)            # copied to VMEM once
    else:
        adj_spec = pl.BlockSpec((BR, BK), lambda l, r, k: (r, k))  # streamed tiles

    in_specs = [
        _resident_spec((NP, HP)),                               # init_x
        adj_spec,                                               # adj
        pl.BlockSpec((1, HP, HP), lambda l, r, k: (l, 0, 0)),   # w_conv[l]
        pl.BlockSpec((1, 1, HP), lambda l, r, k: (l, 0, 0)),    # b_conv[l]
        _resident_spec((1, HP)),                                # wg_self
        _resident_spec((1, HP)),                                # wg_conv
        _resident_spec((1, 1)),                                 # b_gate
        _resident_spec((HP, OP)),                               # w_dec
        _resident_spec((1, OP)),                                # b_dec
    ]
    out_spec = pl.BlockSpec((BR, OP), lambda l, r, k: (r, 0))   # lane-dense row block

    scratch = [
        pltpu.VMEM((NP, HP), f32),      # self_x
        pltpu.VMEM((NP, HP), bf16),     # conv_x (only ever consumed as a bf16 MXU operand)
        pltpu.VMEM((NP, HP), bf16),     # support (MXU rhs for the adj matmul)
        pltpu.VMEM((BR, HP), f32),      # per-row-block accumulator
    ]
    if use_resident:
        scratch += [pltpu.VMEM((NP, NP), bf16),     # resident adjacency
                    pltpu.SemaphoreType.DMA]        # one-time copy semaphore

    flops = int(num_layers * (2 * NP * HP * HP          # support
                              + 2 * NP * NP * HP        # adj @ support
                              + 2 * NP * HP * OP        # fused decoder (every layer)
                              + 8 * NP * HP))           # gate + convex combo
    adj_reads = 1 if use_resident else num_layers
    bytes_accessed = int(adj_reads * NP * NP * 2
                         + NP * HP * 4
                         + num_layers * NP * OP * 4
                         + 2 * (num_layers * HP * HP + HP * OP)
                         + 4 * ((3 + num_layers) * HP + OP + 1))
    cost = pl.CostEstimate(flops=flops, transcendentals=int(num_layers * NP),
                           bytes_accessed=bytes_accessed)

    out_padded = pl.pallas_call(
        _make_kernel(use_resident, BR, BK),
        out_shape=jax.ShapeDtypeStruct((NP, OP), f32),
        grid_spec=pltpu.PrefetchScalarGridSpec(
            num_scalar_prefetch=0,
            grid=(num_layers, R, K),
            in_specs=in_specs,
            out_specs=out_spec,
            scratch_shapes=scratch),
        compiler_params=pltpu.CompilerParams(
            # Every axis carries state through VMEM scratch (layer->layer via
            # self/conv, k via the accumulator, row blocks via the shared per-layer
            # support), so no axis is megacore-'parallel' in this single fused call.
            dimension_semantics=("arbitrary", "arbitrary", "arbitrary"),
            vmem_limit_bytes=budget),
        cost_estimate=cost,
    )(init_p, adj_p, w_conv, b_conv, wg_self, wg_conv, b_gate, w_dec, b_dec)

    return out_padded[:N, :out_c]


def cagnn_reference(x, adj, params):
    """Pure-JAX reference mirroring the kernel's bf16-in / f32-accumulate matmuls."""
    bf, f32 = jnp.bfloat16, jnp.float32
    mm = lambda a, b: jnp.dot(a.astype(bf), b.astype(bf), preferred_element_type=f32)
    init_x = jnp.maximum(mm(x, params["w_enc"]) + params["b_enc"], 0.0)
    self_x = conv_x = init_x
    wgs = params["wg_self"].T
    wgc = params["wg_conv"].T
    for i in range(params["w_conv"].shape[0]):
        support = mm(conv_x, params["w_conv"][i]).astype(bf)
        conv_x = jnp.dot(adj.astype(bf), support,
                         preferred_element_type=f32) + params["b_conv"][i]
        g = jnp.sum(self_x * wgs + conv_x * wgc, axis=-1, keepdims=True) + params["b_gate"]
        a = jax.nn.sigmoid(g)
        self_x = conv_x + a * (self_x - conv_x)
    return mm(self_x, params["w_dec"]) + params["b_dec"]


def make_params(key, in_c, hid_c, out_c, num_layers):
    ks = jax.random.split(key, 8)
    s = 0.1
    return {
        "w_enc":   s * jax.random.normal(ks[0], (in_c, hid_c), jnp.float32),
        "b_enc":   s * jax.random.normal(ks[1], (1, hid_c), jnp.float32),
        "w_conv":  s * jax.random.normal(ks[2], (num_layers, hid_c, hid_c), jnp.float32),
        "b_conv":  s * jax.random.normal(ks[3], (num_layers, 1, hid_c), jnp.float32),
        "wg_self": s * jax.random.normal(ks[4], (hid_c, 1), jnp.float32),
        "wg_conv": s * jax.random.normal(ks[5], (hid_c, 1), jnp.float32),
        "b_gate":  s * jax.random.normal(ks[6], (1, 1), jnp.float32),
        "w_dec":   s * jax.random.normal(ks[7], (hid_c, out_c), jnp.float32),
        "b_dec":   jnp.zeros((1, out_c), jnp.float32),
    }


def make_normalized_adj(key, n):
    """Symmetric binary graph + self loops, D^-1/2 A D^-1/2 normalization."""
    a = (jax.random.uniform(key, (n, n)) < 0.1).astype(jnp.float32)
    a = jnp.maximum(a, a.T)
    a = a + jnp.eye(n, dtype=jnp.float32)
    a = jnp.minimum(a, 1.0)
    deg = jnp.sum(a, axis=1)
    dinv = 1.0 / jnp.sqrt(deg)
    return a * dinv[:, None] * dinv[None, :]


if __name__ == "__main__":
    # Small demo shapes (non-multiples on purpose to exercise the padding path).
    N, IN_C, HID_C, OUT_C, L = 193, 48, 32, 8, 2

    key = jax.random.PRNGKey(0)
    k_x, k_adj, k_p = jax.random.split(key, 3)

    x = jax.random.normal(k_x, (N, IN_C), jnp.float32)
    adj = make_normalized_adj(k_adj, N)
    params = make_params(k_p, IN_C, HID_C, OUT_C, L)

    ref = cagnn_reference(x, adj, params)

    # Small tiles so the demo exercises multi-block grids; run both the
    # VMEM-resident-adjacency path (small graphs) and the HBM-streamed path.
    for mode in ("resident", "stream"):
        out = cagnn_forward(x, adj, params, block_r=128, block_k=128, adj_mode=mode)
        out = jax.block_until_ready(out)
        assert out.shape == (N, OUT_C)
        max_err = float(jnp.max(jnp.abs(out - ref)))
        assert jnp.allclose(out, ref, atol=3e-3, rtol=3e-3), (
            f"{mode} path mismatch vs reference ({max_err})")

    print("KERNEL_OK")
</pallas_src>

<mosaic_0001>
module attributes {stable_mosaic.version = 11 : i64} {
  func.func @kernel(%arg0: i32, %arg1: i32, %arg2: i32, %arg3: memref<256x128xf32, #tpu.memory_space<vmem>>, %arg4: memref<256x256xbf16, #tpu.memory_space<any>>, %arg5: memref<1x128x128xbf16, #tpu.memory_space<vmem>>, %arg6: memref<1x1x128xf32, #tpu.memory_space<vmem>>, %arg7: memref<1x128xf32, #tpu.memory_space<vmem>>, %arg8: memref<1x128xf32, #tpu.memory_space<vmem>>, %arg9: memref<1x1xf32, #tpu.memory_space<vmem>>, %arg10: memref<128x128xbf16, #tpu.memory_space<vmem>>, %arg11: memref<1x128xf32, #tpu.memory_space<vmem>>, %arg12: memref<128x128xf32, #tpu.memory_space<vmem>>, %arg13: memref<256x128xf32, #tpu.memory_space<vmem>>, %arg14: memref<256x128xbf16, #tpu.memory_space<vmem>>, %arg15: memref<256x128xbf16, #tpu.memory_space<vmem>>, %arg16: memref<128x128xf32, #tpu.memory_space<vmem>>, %arg17: memref<256x256xbf16, #tpu.memory_space<vmem>>, %arg18: memref<!tpu.dma_semaphore, #tpu.memory_space<semaphore_mem>>) attributes {dimension_semantics = [#tpu.dimension_semantics<arbitrary>, #tpu.dimension_semantics<arbitrary>, #tpu.dimension_semantics<arbitrary>], iteration_bounds = array<i64: 2, 2, 1>, scalar_prefetch = 0 : i64, scratch_operands = 6 : i64, tpu.core_type = #tpu.core_type<tc>, window_params = [{pipeline_mode = #tpu.pipeline_mode<synchronous>, transform_indices = @transform_0, window_bounds = array<i64: 256, 128>}, {}, {transform_indices = @transform_2, window_bounds = array<i64: 1, 128, 128>}, {transform_indices = @transform_3, window_bounds = array<i64: 1, 1, 128>}, {pipeline_mode = #tpu.pipeline_mode<synchronous>, transform_indices = @transform_4, window_bounds = array<i64: 1, 128>}, {pipeline_mode = #tpu.pipeline_mode<synchronous>, transform_indices = @transform_5, window_bounds = array<i64: 1, 128>}, {pipeline_mode = #tpu.pipeline_mode<synchronous>, transform_indices = @transform_6, window_bounds = array<i64: 1, 1>}, {pipeline_mode = #tpu.pipeline_mode<synchronous>, transform_indices = @transform_7, window_bounds = array<i64: 128, 128>}, {pipeline_mode = #tpu.pipeline_mode<synchronous>, transform_indices = @transform_8, window_bounds = array<i64: 1, 128>}, {transform_indices = @transform_9, window_bounds = array<i64: 128, 128>}]} {
    %c256_i32 = arith.constant 256 : i32
    %0 = arith.muli %arg2, %c256_i32 : i32
    %1 = tpu.assume_multiple %0, 256 : i32
    %c128_i32 = arith.constant 128 : i32
    %2 = arith.muli %arg1, %c128_i32 : i32
    %3 = tpu.assume_multiple %2, 128 : i32
    %c0_i32 = arith.constant 0 : i32
    %4 = arith.cmpi eq, %arg0, %c0_i32 : i32
    %c0_i32_0 = arith.constant 0 : i32
    %5 = arith.cmpi eq, %arg1, %c0_i32_0 : i32
    %6 = arith.andi %4, %5 : i1
    %c0_i32_1 = arith.constant 0 : i32
    %7 = arith.cmpi eq, %arg2, %c0_i32_1 : i32
    %8 = arith.andi %6, %7 : i1
    %9 = arith.extui %8 : i1 to i32
    %c0_i32_2 = arith.constant 0 : i32
    %10 = arith.cmpi ne, %9, %c0_i32_2 : i32
    scf.if %10 {
      tpu.enqueue_dma source(%arg4 : memref<256x256xbf16, #tpu.memory_space<any>>) target(%arg17 : memref<256x256xbf16, #tpu.memory_space<vmem>>) target_semaphore(%arg18 : memref<!tpu.dma_semaphore, #tpu.memory_space<semaphore_mem>>)
      tpu.wait_dma2 semaphore(%arg18 : memref<!tpu.dma_semaphore, #tpu.memory_space<semaphore_mem>>) src(%arg4 : memref<256x256xbf16, #tpu.memory_space<any>>) dst(%arg17 : memref<256x256xbf16, #tpu.memory_space<vmem>>)
    } else {
    }
    %c0_i32_3 = arith.constant 0 : i32
    %11 = arith.cmpi eq, %arg0, %c0_i32_3 : i32
    %c0_i32_4 = arith.constant 0 : i32
    %12 = arith.cmpi eq, %arg1, %c0_i32_4 : i32
    %13 = arith.andi %11, %12 : i1
    %14 = arith.extui %13 : i1 to i32
    %c0_i32_5 = arith.constant 0 : i32
    %15 = arith.cmpi ne, %14, %c0_i32_5 : i32
    scf.if %15 {
      %34 = arith.index_cast %1 : i32 to index
      %c0_16 = arith.constant 0 : index
      %35 = vector.load %arg3[%34, %c0_16] : memref<256x128xf32, #tpu.memory_space<vmem>>, vector<256x128xf32>
      %36 = arith.index_cast %1 : i32 to index
      %c0_17 = arith.constant 0 : index
      %37 = vector.load %arg13[%36, %c0_17] : memref<256x128xf32, #tpu.memory_space<vmem>>, vector<256x128xf32>
      tpu.vector_store %arg13[%36, %c0_17], %35 {strides = array<i32>} : memref<256x128xf32, #tpu.memory_space<vmem>>, vector<256x128xf32>,
      %38 = arith.truncf %35 : vector<256x128xf32> to vector<256x128xbf16>
      %39 = arith.index_cast %1 : i32 to index
      %c0_18 = arith.constant 0 : index
      %40 = vector.load %arg14[%39, %c0_18] : memref<256x128xbf16, #tpu.memory_space<vmem>>, vector<256x128xbf16>
      tpu.vector_store %arg14[%39, %c0_18], %38 {strides = array<i32>} : memref<256x128xbf16, #tpu.memory_space<vmem>>, vector<256x128xbf16>,
    } else {
    }
    %c0_i32_6 = arith.constant 0 : i32
    %16 = arith.cmpi eq, %arg1, %c0_i32_6 : i32
    %17 = arith.extui %16 : i1 to i32
    %c0_i32_7 = arith.constant 0 : i32
    %18 = arith.cmpi ne, %17, %c0_i32_7 : i32
    scf.if %18 {
      %34 = arith.index_cast %1 : i32 to index
      %c0_16 = arith.constant 0 : index
      %35 = vector.load %arg14[%34, %c0_16] : memref<256x128xbf16, #tpu.memory_space<vmem>>, vector<256x128xbf16>
      %c0_17 = arith.constant 0 : index
      %c0_18 = arith.constant 0 : index
      %c0_19 = arith.constant 0 : index
      %36 = vector.load %arg5[%c0_17, %c0_18, %c0_19] : memref<1x128x128xbf16, #tpu.memory_space<vmem>>, vector<1x128x128xbf16>
      %37 = vector.shape_cast %36 : vector<1x128x128xbf16> to vector<128x128xbf16>
      %cst_20 = arith.constant dense<0.000000e+00> : vector<256x128xf32>
      %38 = tpu.matmul %35, %37, %cst_20 {dimension_numbers = #tpu.dot_dimension_numbers<[1], [0], [0], [1], [0, 0, 1, 1], [], []>} : vector<256x128xbf16>, vector<128x128xbf16>, vector<256x128xf32> -> vector<256x128xf32>
      %39 = arith.truncf %38 : vector<256x128xf32> to vector<256x128xbf16>
      %40 = arith.index_cast %1 : i32 to index
      %c0_21 = arith.constant 0 : index
      %41 = vector.load %arg15[%40, %c0_21] : memref<256x128xbf16, #tpu.memory_space<vmem>>, vector<256x128xbf16>
      tpu.vector_store %arg15[%40, %c0_21], %39 {strides = array<i32>} : memref<256x128xbf16, #tpu.memory_space<vmem>>, vector<256x128xbf16>,
    } else {
    }
    %c0_i32_8 = arith.constant 0 : i32
    %19 = arith.cmpi eq, %arg2, %c0_i32_8 : i32
    %20 = arith.extui %19 : i1 to i32
    %c0_i32_9 = arith.constant 0 : i32
    %21 = arith.cmpi ne, %20, %c0_i32_9 : i32
    scf.if %21 {
      %cst_16 = arith.constant 0.000000e+00 : f32
      %34 = vector.broadcast %cst_16 : f32 to vector<128x128xf32>
      %c0_17 = arith.constant 0 : index
      %c0_18 = arith.constant 0 : index
      %35 = vector.load %arg16[%c0_17, %c0_18] : memref<128x128xf32, #tpu.memory_space<vmem>>, vector<128x128xf32>
      tpu.vector_store %arg16[%c0_17, %c0_18], %34 {strides = array<i32>} : memref<128x128xf32, #tpu.memory_space<vmem>>, vector<128x128xf32>,
    } else {
    }
    %22 = arith.index_cast %3 : i32 to index
    %23 = arith.index_cast %1 : i32 to index
    %24 = vector.load %arg17[%22, %23] : memref<256x256xbf16, #tpu.memory_space<vmem>>, vector<128x256xbf16>
    %c0 = arith.constant 0 : index
    %c0_10 = arith.constant 0 : index
    %25 = vector.load %arg16[%c0, %c0_10] : memref<128x128xf32, #tpu.memory_space<vmem>>, vector<128x128xf32>
    %26 = arith.index_cast %1 : i32 to index
    %c0_11 = arith.constant 0 : index
    %27 = vector.load %arg15[%26, %c0_11] : memref<256x128xbf16, #tpu.memory_space<vmem>>, vector<256x128xbf16>
    %cst = arith.constant dense<0.000000e+00> : vector<128x128xf32>
    %28 = tpu.matmul %24, %27, %cst {dimension_numbers = #tpu.dot_dimension_numbers<[1], [0], [0], [1], [0, 0, 1, 1], [], []>} : vector<128x256xbf16>, vector<256x128xbf16>, vector<128x128xf32> -> vector<128x128xf32>
    %29 = arith.addf %25, %28 : vector<128x128xf32>
    %c0_12 = arith.constant 0 : index
    %c0_13 = arith.constant 0 : index
    %30 = vector.load %arg16[%c0_12, %c0_13] : memref<128x128xf32, #tpu.memory_space<vmem>>, vector<128x128xf32>
    tpu.vector_store %arg16[%c0_12, %c0_13], %29 {strides = array<i32>} : memref<128x128xf32, #tpu.memory_space<vmem>>, vector<128x128xf32>,
    %c0_i32_14 = arith.constant 0 : i32
    %31 = arith.cmpi eq, %arg2, %c0_i32_14 : i32
    %32 = arith.extui %31 : i1 to i32
    %c0_i32_15 = arith.constant 0 : i32
    %33 = arith.cmpi ne, %32, %c0_i32_15 : i32
    scf.if %33 {
      %c0_16 = arith.constant 0 : index
      %c0_17 = arith.constant 0 : index
      %34 = vector.load %arg16[%c0_16, %c0_17] : memref<128x128xf32, #tpu.memory_space<vmem>>, vector<128x128xf32>
      %c0_18 = arith.constant 0 : index
      %c0_19 = arith.constant 0 : index
      %c0_20 = arith.constant 0 : index
      %35 = vector.load %arg6[%c0_18, %c0_19, %c0_20] : memref<1x1x128xf32, #tpu.memory_space<vmem>>, vector<1x1x128xf32>
      %36 = vector.shape_cast %35 : vector<1x1x128xf32> to vector<1x128xf32>
      %37 = vector.broadcast %36 : vector<1x128xf32> to vector<128x128xf32>
      %38 = arith.addf %34, %37 : vector<128x128xf32>
      %39 = arith.index_cast %3 : i32 to index
      %c0_21 = arith.constant 0 : index
      %40 = vector.load %arg13[%39, %c0_21] : memref<256x128xf32, #tpu.memory_space<vmem>>, vector<128x128xf32>
      %c0_22 = arith.constant 0 : index
      %c0_23 = arith.constant 0 : index
      %41 = vector.load %arg7[%c0_22, %c0_23] : memref<1x128xf32, #tpu.memory_space<vmem>>, vector<1x128xf32>
      %42 = vector.broadcast %41 : vector<1x128xf32> to vector<128x128xf32>
      %43 = arith.mulf %40, %42 : vector<128x128xf32>
      %c0_24 = arith.constant 0 : index
      %c0_25 = arith.constant 0 : index
      %44 = vector.load %arg8[%c0_24, %c0_25] : memref<1x128xf32, #tpu.memory_space<vmem>>, vector<1x128xf32>
      %45 = vector.broadcast %44 : vector<1x128xf32> to vector<128x128xf32>
      %46 = arith.mulf %38, %45 : vector<128x128xf32>
      %47 = arith.addf %43, %46 : vector<128x128xf32>
      %cst_26 = arith.constant dense<0.000000e+00> : vector<128xf32>
      %48 = vector.multi_reduction <add>, %47, %cst_26 [1] : vector<128x128xf32> to vector<128xf32>
      %49 = vector.shape_cast %48 : vector<128xf32> to vector<128x1xf32>
      %c0_27 = arith.constant 0 : index
      %c0_28 = arith.constant 0 : index
      %50 = vector.load %arg9[%c0_27, %c0_28] : memref<1x1xf32, #tpu.memory_space<vmem>>, vector<1x1xf32>
      %51 = vector.broadcast %50 : vector<1x1xf32> to vector<128x1xf32>
      %52 = arith.addf %49, %51 : vector<128x1xf32>
      %53 = arith.negf %52 : vector<128x1xf32>
      %54 = math.exp %53 : vector<128x1xf32>
      %cst_29 = arith.constant 1.000000e+00 : f32
      %55 = vector.broadcast %cst_29 : f32 to vector<128x1xf32>
      %56 = arith.addf %55, %54 : vector<128x1xf32>
      %57 = arith.divf %55, %56 : vector<128x1xf32>
      %58 = arith.subf %40, %38 : vector<128x128xf32>
      %59 = vector.broadcast %57 : vector<128x1xf32> to vector<128x128xf32>
      %60 = arith.mulf %59, %58 : vector<128x128xf32>
      %61 = arith.addf %38, %60 : vector<128x128xf32>
      %62 = arith.index_cast %3 : i32 to index
      %c0_30 = arith.constant 0 : index
      %63 = vector.load %arg13[%62, %c0_30] : memref<256x128xf32, #tpu.memory_space<vmem>>, vector<128x128xf32>
      tpu.vector_store %arg13[%62, %c0_30], %61 {strides = array<i32>} : memref<256x128xf32, #tpu.memory_space<vmem>>, vector<128x128xf32>,
      %64 = arith.truncf %38 : vector<128x128xf32> to vector<128x128xbf16>
      %65 = arith.index_cast %3 : i32 to index
      %c0_31 = arith.constant 0 : index
      %66 = vector.load %arg14[%65, %c0_31] : memref<256x128xbf16, #tpu.memory_space<vmem>>, vector<128x128xbf16>
      tpu.vector_store %arg14[%65, %c0_31], %64 {strides = array<i32>} : memref<256x128xbf16, #tpu.memory_space<vmem>>, vector<128x128xbf16>,
      %67 = arith.truncf %61 : vector<128x128xf32> to vector<128x128xbf16>
      %c0_32 = arith.constant 0 : index
      %c0_33 = arith.constant 0 : index
      %68 = vector.load %arg10[%c0_32, %c0_33] : memref<128x128xbf16, #tpu.memory_space<vmem>>, vector<128x128xbf16>
      %cst_34 = arith.constant dense<0.000000e+00> : vector<128x128xf32>
      %69 = tpu.matmul %67, %68, %cst_34 {dimension_numbers = #tpu.dot_dimension_numbers<[1], [0], [0], [1], [0, 0, 1, 1], [], []>} : vector<128x128xbf16>, vector<128x128xbf16>, vector<128x128xf32> -> vector<128x128xf32>
      %c0_35 = arith.constant 0 : index
      %c0_36 = arith.constant 0 : index
      %70 = vector.load %arg11[%c0_35, %c0_36] : memref<1x128xf32, #tpu.memory_space<vmem>>, vector<1x128xf32>
      %71 = vector.broadcast %70 : vector<1x128xf32> to vector<128x128xf32>
      %72 = arith.addf %69, %71 : vector<128x128xf32>
      %c0_37 = arith.constant 0 : index
      %c0_38 = arith.constant 0 : index
      %73 = vector.load %arg12[%c0_37, %c0_38] : memref<128x128xf32, #tpu.memory_space<vmem>>, vector<128x128xf32>
      tpu.vector_store %arg12[%c0_37, %c0_38], %72 {strides = array<i32>} : memref<128x128xf32, #tpu.memory_space<vmem>>, vector<128x128xf32>,
    } else {
    }
    return
  }
  func.func @transform_0(%arg0: i32, %arg1: i32, %arg2: i32) -> (i32, i32) {
    %c0_i32 = arith.constant 0 : i32
    %c0_i32_0 = arith.constant 0 : i32
    %c0_i32_1 = arith.constant 0 : i32
    return %c0_i32, %c0_i32_0 : i32, i32
  }
  func.func @transform_2(%arg0: i32, %arg1: i32, %arg2: i32) -> (i32, i32, i32) {
    %c0_i32 = arith.constant 0 : i32
    %c0_i32_0 = arith.constant 0 : i32
    %c0_i32_1 = arith.constant 0 : i32
    return %arg0, %c0_i32, %c0_i32_0 : i32, i32, i32
  }
  func.func @transform_3(%arg0: i32, %arg1: i32, %arg2: i32) -> (i32, i32, i32) {
    %c0_i32 = arith.constant 0 : i32
    %c0_i32_0 = arith.constant 0 : i32
    %c0_i32_1 = arith.constant 0 : i32
    return %arg0, %c0_i32, %c0_i32_0 : i32, i32, i32
  }
  func.func @transform_4(%arg0: i32, %arg1: i32, %arg2: i32) -> (i32, i32) {
    %c0_i32 = arith.constant 0 : i32
    %c0_i32_0 = arith.constant 0 : i32
    %c0_i32_1 = arith.constant 0 : i32
    return %c0_i32, %c0_i32_0 : i32, i32
  }
  func.func @transform_5(%arg0: i32, %arg1: i32, %arg2: i32) -> (i32, i32) {
    %c0_i32 = arith.constant 0 : i32
    %c0_i32_0 = arith.constant 0 : i32
    %c0_i32_1 = arith.constant 0 : i32
    return %c0_i32, %c0_i32_0 : i32, i32
  }
  func.func @transform_6(%arg0: i32, %arg1: i32, %arg2: i32) -> (i32, i32) {
    %c0_i32 = arith.constant 0 : i32
    %c0_i32_0 = arith.constant 0 : i32
    %c0_i32_1 = arith.constant 0 : i32
    return %c0_i32, %c0_i32_0 : i32, i32
  }
  func.func @transform_7(%arg0: i32, %arg1: i32, %arg2: i32) -> (i32, i32) {
    %c0_i32 = arith.constant 0 : i32
    %c0_i32_0 = arith.constant 0 : i32
    %c0_i32_1 = arith.constant 0 : i32
    return %c0_i32, %c0_i32_0 : i32, i32
  }
  func.func @transform_8(%arg0: i32, %arg1: i32, %arg2: i32) -> (i32, i32) {
    %c0_i32 = arith.constant 0 : i32
    %c0_i32_0 = arith.constant 0 : i32
    %c0_i32_1 = arith.constant 0 : i32
    return %c0_i32, %c0_i32_0 : i32, i32
  }
  func.func @transform_9(%arg0: i32, %arg1: i32, %arg2: i32) -> (i32, i32) {
    %c0_i32 = arith.constant 0 : i32
    %c0_i32_0 = arith.constant 0 : i32
    return %arg1, %c0_i32 : i32, i32
  }
}

</mosaic_0001>

<llo_original>
// kernel: tpu_custom_call.1
$region0: #{tpu_custom_call.1}
  #allocation0 [shape = 'u32[]', space=smem, size = 0x4, offset = 0x4, fixed_abs, tag = 'smem constant byte address 0x4 - core index']
  #allocation1 [shape = 'u32[144,128]{1,0:T(1,128)}', space=vmem, size = 0x12000, scoped, tag = 'internal scratch']
  #allocation2 [shape = 'f32[256,128]{1,0:T(8,128)}', space=vmem, size = 0x20000, scoped, tag = 'scratch operand']
  #allocation3 [shape = 'bf16[256,128]{1,0:T(16,128)(2,1)}', space=vmem, size = 0x10000, scoped, tag = 'scratch operand']
  #allocation4 [shape = 'bf16[256,128]{1,0:T(16,128)(2,1)}', space=vmem, size = 0x10000, scoped, tag = 'scratch operand']
  #allocation5 [shape = 'f32[128,128]{1,0:T(8,128)}', space=vmem, size = 0x10000, scoped, tag = 'scratch operand']
  #allocation6 [shape = 'bf16[256,256]{1,0:T(16,128)(2,1)}', space=vmem, size = 0x20000, scoped, tag = 'scratch operand']
  #allocation7 [shape = 's32[1]{0}', space=sflag, size = 0x4, scoped, tag = 'scratch operand']
  #allocation8 [shape = 'f32[1,1]{1,0:T(1,128)S(1)}', space=vmem, size = 0x200, scoped, tag = 'scoped memory for tpu_custom_call.1']
  #allocation16 [shape = 's32[]', space=sflag, size = 0x4, offset = 0, fixed_abs, tag = 'sflag constant byte address 0x0 - dummy sync flag']
  %s0 = inlined_call_operand.hbm [shape: f32[256,128], index: 0, kind: input, shape index: {}]
  %s1 = inlined_call_operand.hbm [shape: bf16[256,256], index: 1, kind: input, shape index: {}]
  %s2 = inlined_call_operand.hbm [shape: bf16[2,128,128], index: 2, kind: input, shape index: {}]
  %s3 = inlined_call_operand.vmem [shape: f32[2,1,128], index: 3, kind: input, shape index: {}]
  %s4 = inlined_call_operand.vmem [shape: f32[1,128], index: 4, kind: input, shape index: {}]
  %s5 = inlined_call_operand.vmem [shape: f32[1,128], index: 5, kind: input, shape index: {}]
  %s6 = inlined_call_operand.<no memory space> [shape: f32[1,1], index: 6, kind: input, shape index: {}]
  %s7 = inlined_call_operand.hbm [shape: bf16[128,128], index: 7, kind: input, shape index: {}]
  %s8 = inlined_call_operand.vmem [shape: f32[1,128], index: 8, kind: input, shape index: {}]
  %s9 = inlined_call_operand.hbm [shape: f32[256,128], index: 9, kind: output, shape index: {}]
  %s10 = sld [smem:[#allocation0]]
  $region97: #{tpu_custom_call.1} parent=0
    _
  %s12 = ssub.s32 1, %s10
  %s13 = scalar_select 0, %s12, %s10
  %v14 = vstv %s6
  %15 = vst [vmem:[#allocation8] sm:$0x1] %v14
  $region1: #{tpu_custom_call.1} parent=0
    #allocation9 [shape = 'u8[131072]{0}', space=vmem, size = 0x20000, scoped, tag = 'input window, operand 0, single buffered']
    #allocation10 [shape = 's32[2]{0}', space=sflag, size = 0x8, scoped, tag = 'scoped memory for tpu_custom_call.1']
    #allocation11 [shape = 's32[2]{0}', space=sflag, size = 0x8, scoped, tag = 'scoped memory for tpu_custom_call.1']
    #allocation12 [shape = 'u8[65536]{0}', space=vmem, size = 0x10000, scoped, tag = 'input window, operand 2']
    #allocation13 [shape = 's32[2]{0}', space=sflag, size = 0x8, scoped, tag = 'scoped memory for tpu_custom_call.1']
    #allocation14 [shape = 'u8[32768]{0}', space=vmem, size = 0x8000, scoped, tag = 'input window, operand 7, single buffered']
    #allocation15 [shape = 'u8[131072]{0}', space=vmem, size = 0x20000, scoped, tag = 'output window, operand 0']
    %16 = vsyncpa [#allocation10], 0
    %17 = vsyncpa [#allocation13], 0
    %s18 = scalar_lea.sflag [#allocation13], 1
    %19 = vsyncpa %s18, 0
    %20 = vsyncpa [#allocation11], 0
    %s21 = scalar_lea.sflag [#allocation11], 1
    %22 = vsyncpa %s21, 0
    loop: start=0, step=1, limit=6
    $region2: #{tpu_custom_call.1} parent=1 // loop_pre_header
      _
    $region3: #{tpu_custom_call.1} parent=1 // loop_header
      %s24 = sphi 0, %s28
      %p25 = scmp.ge.s32.totalorder %s24, 6
      %s31 = sphi 0, %s50
      %s32 = sphi 0, %s46
      %s33 = sphi 0, %s42
      %s34 = sphi 0, %s31
      %s35 = sphi 0, %s32
      %s36 = sphi 0, %s33
      %s37 = sphi 0, %s34
      %s38 = sphi 0, %s35
      %s39 = sphi 0, %s36
      %s51 = sphi 0, %s51
      %s53 = sphi 0, %s51
      %s54 = sphi 0, %s53
      %s68 = sphi 0, %s54
      %s74 = sphi 0, %s76
      %s77 = sphi 0, %s74
      %s78 = sphi 0, %s77
      %s94 = sphi 0, %s78
      %s100 = sphi 0, %s102
      %s103 = sphi 0, %s100
      %s104 = sphi 0, %s103
      %s120 = sphi 0, %s104
      %s124 = sphi 0, %s124
      %s126 = sphi 0, %s124
      %s127 = sphi 0, %s126
      %s141 = sphi 0, %s127
      %s145 = sphi 0, %s145
      %s147 = sphi 0, %s145
      %s148 = sphi 0, %s147
      %s162 = sphi 0, %s148
      %s166 = sphi 0, %s166
      %s168 = sphi 0, %s166
      %s169 = sphi 0, %s168
      %s183 = sphi 0, %s169
      %s187 = sphi 0, %s187
      %s189 = sphi 0, %s187
      %s190 = sphi 0, %s189
      %s204 = sphi 0, %s190
      %s208 = sphi 0, %s208
      %s210 = sphi 0, %s208
      %s211 = sphi 0, %s210
      %s225 = sphi 0, %s211
      %s231 = sphi 0, %s233
      %s234 = sphi 0, %s231
      %s235 = sphi 0, %s234
      %s251 = sphi 0, %s235
    $region4: #{tpu_custom_call.1} parent=1 // loop_header_branch
      %27 = sbr.rel (%p25) target = $region8
    $region5: #{tpu_custom_call.1} parent=1 // loop_body
      %s29 = ssub.s32 %s24, 1
      %s30 = ssub.s32 %s24, 2
      %s40 = sadd.s32 1, %s33
      %p41 = scmp.ge.s32.totalorder %s40, 1
      %s42 = scalar_select %p41, 0, %s40
      %s43 = sadd.s32 1, %s32
      %s44 = scalar_select %p41, %s43, %s32
      %p45 = scmp.ge.s32.totalorder %s44, 2
      %s46 = scalar_select %p45, 0, %s44
      %s47 = sadd.s32 1, %s31
      %s48 = scalar_select %p45, %s47, %s31
      %p49 = scmp.ge.s32.totalorder %s48, 2
      %s50 = scalar_select %p49, 0, %s48
      %s52 = sadd.s32 %s51, 1
      %p55 = scmp.eq.s32.totalorder %s24, 3
      %p56 = scmp.ne.s32.totalorder %s51, %s53
      %p57 = scmp.eq.s32.totalorder %s24, 0
      %p58 = por %p56, %p57
      %p59 = scmp.ne.s32.totalorder %s51, %s53
      %p60 = scmp.eq.s32.totalorder %s29, 3
      %p61 = por %p59, %p60
      %p62 = scmp.ne.s32.totalorder %s53, %s54
      %p63 = scmp.eq.s32.totalorder %s29, 0
      %p64 = por %p62, %p63
      %p65 = scmp.ne.s32.totalorder %s53, %s54
      %p66 = scmp.eq.s32.totalorder %s30, 3
      %p67 = por %p65, %p66
      %p69 = scmp.ne.s32.totalorder %s54, %s68
      %p70 = scmp.eq.s32.totalorder %s30, 0
      %p71 = por %p69, %p70
      %s72 = ssub.s32 %s31, %s50
      %p73 = scmp.eq.s32.totalorder %s72, 0
      %s75 = sadd.s32 %s74, 1
      %s76 = scalar_select %p73, %s74, %s75
      %p79 = pneg %p73
      %p80 = scmp.eq.s32.totalorder %s24, 3
      %p81 = por %p79, %p80
      %p82 = scmp.ne.s32.totalorder %s74, %s77
      %p83 = scmp.eq.s32.totalorder %s24, 0
      %p84 = por %p82, %p83
      %p85 = scmp.ne.s32.totalorder %s74, %s77
      %p86 = scmp.eq.s32.totalorder %s29, 3
      %p87 = por %p85, %p86
      %p88 = scmp.ne.s32.totalorder %s77, %s78
      %p89 = scmp.eq.s32.totalorder %s29, 0
      %p90 = por %p88, %p89
      %p91 = scmp.ne.s32.totalorder %s77, %s78
      %p92 = scmp.eq.s32.totalorder %s30, 3
      %p93 = por %p91, %p92
      %p95 = scmp.ne.s32.totalorder %s78, %s94
      %p96 = scmp.eq.s32.totalorder %s30, 0
      %p97 = por %p95, %p96
      %s98 = ssub.s32 %s31, %s50
      %p99 = scmp.eq.s32.totalorder %s98, 0
      %s101 = sadd.s32 %s100, 1
      %s102 = scalar_select %p99, %s100, %s101
      %p105 = pneg %p99
      %p106 = scmp.eq.s32.totalorder %s24, 3
      %p107 = por %p105, %p106
      %p108 = scmp.ne.s32.totalorder %s100, %s103
      %p109 = scmp.eq.s32.totalorder %s24, 0
      %p110 = por %p108, %p109
      %p111 = scmp.ne.s32.totalorder %s100, %s103
      %p112 = scmp.eq.s32.totalorder %s29, 3
      %p113 = por %p111, %p112
      %p114 = scmp.ne.s32.totalorder %s103, %s104
      %p115 = scmp.eq.s32.totalorder %s29, 0
      %p116 = por %p114, %p115
      %p117 = scmp.ne.s32.totalorder %s103, %s104
      %p118 = scmp.eq.s32.totalorder %s30, 3
      %p119 = por %p117, %p118
      %p121 = scmp.ne.s32.totalorder %s104, %s120
      %p122 = scmp.eq.s32.totalorder %s30, 0
      %p123 = por %p121, %p122
      %s125 = sadd.s32 %s124, 1
      %p128 = scmp.eq.s32.totalorder %s24, 3
      %p129 = scmp.ne.s32.totalorder %s124, %s126
      %p130 = scmp.eq.s32.totalorder %s24, 0
      %p131 = por %p129, %p130
      %p132 = scmp.ne.s32.totalorder %s124, %s126
      %p133 = scmp.eq.s32.totalorder %s29, 3
      %p134 = por %p132, %p133
      %p135 = scmp.ne.s32.totalorder %s126, %s127
      %p136 = scmp.eq.s32.totalorder %s29, 0
      %p137 = por %p135, %p136
      %p138 = scmp.ne.s32.totalorder %s126, %s127
      %p139 = scmp.eq.s32.totalorder %s30, 3
      %p140 = por %p138, %p139
      %p142 = scmp.ne.s32.totalorder %s127, %s141
      %p143 = scmp.eq.s32.totalorder %s30, 0
      %p144 = por %p142, %p143
      %s146 = sadd.s32 %s145, 1
      %p149 = scmp.eq.s32.totalorder %s24, 3
      %p150 = scmp.ne.s32.totalorder %s145, %s147
      %p151 = scmp.eq.s32.totalorder %s24, 0
      %p152 = por %p150, %p151
      %p153 = scmp.ne.s32.totalorder %s145, %s147
      %p154 = scmp.eq.s32.totalorder %s29, 3
      %p155 = por %p153, %p154
      %p156 = scmp.ne.s32.totalorder %s147, %s148
      %p157 = scmp.eq.s32.totalorder %s29, 0
      %p158 = por %p156, %p157
      %p159 = scmp.ne.s32.totalorder %s147, %s148
      %p160 = scmp.eq.s32.totalorder %s30, 3
      %p161 = por %p159, %p160
      %p163 = scmp.ne.s32.totalorder %s148, %s162
      %p164 = scmp.eq.s32.totalorder %s30, 0
      %p165 = por %p163, %p164
      %s167 = sadd.s32 %s166, 1
      %p170 = scmp.eq.s32.totalorder %s24, 3
      %p171 = scmp.ne.s32.totalorder %s166, %s168
      %p172 = scmp.eq.s32.totalorder %s24, 0
      %p173 = por %p171, %p172
      %p174 = scmp.ne.s32.totalorder %s166, %s168
      %p175 = scmp.eq.s32.totalorder %s29, 3
      %p176 = por %p174, %p175
      %p177 = scmp.ne.s32.totalorder %s168, %s169
      %p178 = scmp.eq.s32.totalorder %s29, 0
      %p179 = por %p177, %p178
      %p180 = scmp.ne.s32.totalorder %s168, %s169
      %p181 = scmp.eq.s32.totalorder %s30, 3
      %p182 = por %p180, %p181
      %p184 = scmp.ne.s32.totalorder %s169, %s183
      %p185 = scmp.eq.s32.totalorder %s30, 0
      %p186 = por %p184, %p185
      %s188 = sadd.s32 %s187, 1
      %p191 = scmp.eq.s32.totalorder %s24, 3
      %p192 = scmp.ne.s32.totalorder %s187, %s189
      %p193 = scmp.eq.s32.totalorder %s24, 0
      %p194 = por %p192, %p193
      %p195 = scmp.ne.s32.totalorder %s187, %s189
      %p196 = scmp.eq.s32.totalorder %s29, 3
      %p197 = por %p195, %p196
      %p198 = scmp.ne.s32.totalorder %s189, %s190
      %p199 = scmp.eq.s32.totalorder %s29, 0
      %p200 = por %p198, %p199
      %p201 = scmp.ne.s32.totalorder %s189, %s190
      %p202 = scmp.eq.s32.totalorder %s30, 3
      %p203 = por %p201, %p202
      %p205 = scmp.ne.s32.totalorder %s190, %s204
      %p206 = scmp.eq.s32.totalorder %s30, 0
      %p207 = por %p205, %p206
      %s209 = sadd.s32 %s208, 1
      %p212 = scmp.eq.s32.totalorder %s24, 3
      %p213 = scmp.ne.s32.totalorder %s208, %s210
      %p214 = scmp.eq.s32.totalorder %s24, 0
      %p215 = por %p213, %p214
      %p216 = scmp.ne.s32.totalorder %s208, %s210
      %p217 = scmp.eq.s32.totalorder %s29, 3
      %p218 = por %p216, %p217
      %p219 = scmp.ne.s32.totalorder %s210, %s211
      %p220 = scmp.eq.s32.totalorder %s29, 0
      %p221 = por %p219, %p220
      %p222 = scmp.ne.s32.totalorder %s210, %s211
      %p223 = scmp.eq.s32.totalorder %s30, 3
      %p224 = por %p222, %p223
      %p226 = scmp.ne.s32.totalorder %s211, %s225
      %p227 = scmp.eq.s32.totalorder %s30, 0
      %p228 = por %p226, %p227
      %s229 = ssub.s32 %s32, %s46
      %p230 = scmp.eq.s32.totalorder %s229, 0
      %s232 = sadd.s32 %s231, 1
      %s233 = scalar_select %p230, %s231, %s232
      %p236 = pneg %p230
      %p237 = scmp.eq.s32.totalorder %s24, 3
      %p238 = por %p236, %p237
      %p239 = scmp.ne.s32.totalorder %s231, %s234
      %p240 = scmp.eq.s32.totalorder %s24, 0
      %p241 = por %p239, %p240
      %p242 = scmp.ne.s32.totalorder %s231, %s234
      %p243 = scmp.eq.s32.totalorder %s29, 3
      %p244 = por %p242, %p243
      %p245 = scmp.ne.s32.totalorder %s234, %s235
      %p246 = scmp.eq.s32.totalorder %s29, 0
      %p247 = por %p245, %p246
      %p248 = scmp.ne.s32.totalorder %s234, %s235
      %p249 = scmp.eq.s32.totalorder %s30, 3
      %p250 = por %p248, %p249
      %p252 = scmp.ne.s32.totalorder %s235, %s251
      %p253 = scmp.eq.s32.totalorder %s30, 0
      %p254 = por %p252, %p253
      %p255 = scmp.le.s32.totalorder 1, %s24
      %p256 = scmp.lt.s32.totalorder %s24, 5
      %p257 = pnand %p255, %p256
      %p258 = pneg %p257
      // Predicated region
      $region9: #{tpu_custom_call.1} parent=5 // pred_check
        _
      $region10: #{tpu_custom_call.1} parent=5 // pred_check_branch
        %260 = sbr.rel (%p257) target = $region12
      $region11: #{tpu_custom_call.1} parent=5 // pred_region
        %s261 = ssub.s32 %s24, 1
        // Predicated region
        $region13: #{tpu_custom_call.1} parent=11 // pred_check
          %p262 = pneg %p64
        $region14: #{tpu_custom_call.1} parent=11 // pred_check_branch
          %264 = sbr.rel (%p262) target = $region16
        $region15: #{tpu_custom_call.1} parent=11 // pred_region
          %s266 = ssub.s32 4096, 4096
          %267 = vsyncadd [#allocation10], %s266
          %s268 = sshll.u32 [#allocation9], 4
          %s269 = int_to_ptr.vmem [resolvable:$true] %s268
          %274 = dma.hbm_to_vmem [thread:$0]  %s0, 4096, %s269, [#allocation10], 128, 128, 8
        $region16: #{tpu_custom_call.1} parent=11 // pred_fallthru
          _
        // Predicated region
        $region17: #{tpu_custom_call.1} parent=11 // pred_check
          %p275 = pneg %p137
        $region18: #{tpu_custom_call.1} parent=11 // pred_check_branch
          %277 = sbr.rel (%p275) target = $region20
        $region19: #{tpu_custom_call.1} parent=11 // pred_region
          _
        $region20: #{tpu_custom_call.1} parent=11 // pred_fallthru
          _
        // Predicated region
        $region21: #{tpu_custom_call.1} parent=11 // pred_check
          %p278 = pneg %p158
        $region22: #{tpu_custom_call.1} parent=11 // pred_check_branch
          %280 = sbr.rel (%p278) target = $region24
        $region23: #{tpu_custom_call.1} parent=11 // pred_region
          _
        $region24: #{tpu_custom_call.1} parent=11 // pred_fallthru
          _
        // Predicated region
        $region25: #{tpu_custom_call.1} parent=11 // pred_check
          %p281 = pneg %p179
        $region26: #{tpu_custom_call.1} parent=11 // pred_check_branch
          %283 = sbr.rel (%p281) target = $region28
        $region27: #{tpu_custom_call.1} parent=11 // pred_region
          _
        $region28: #{tpu_custom_call.1} parent=11 // pred_fallthru
          _
        // Predicated region
        $region29: #{tpu_custom_call.1} parent=11 // pred_check
          %p284 = pneg %p200
        $region30: #{tpu_custom_call.1} parent=11 // pred_check_branch
          %286 = sbr.rel (%p284) target = $region32
        $region31: #{tpu_custom_call.1} parent=11 // pred_region
          %s288 = ssub.s32 1024, 1024
          %289 = vsyncadd [#allocation13], %s288
          %s290 = sshll.u32 [#allocation14], 4
          %s291 = int_to_ptr.vmem [resolvable:$true] %s290
          %296 = dma.hbm_to_vmem [thread:$0]  %s7, 1024, %s291, [#allocation13], 64, 64, 4
        $region32: #{tpu_custom_call.1} parent=11 // pred_fallthru
          _
        // Predicated region
        $region33: #{tpu_custom_call.1} parent=11 // pred_check
          %p297 = pneg %p221
        $region34: #{tpu_custom_call.1} parent=11 // pred_check_branch
          %299 = sbr.rel (%p297) target = $region36
        $region35: #{tpu_custom_call.1} parent=11 // pred_region
          _
        $region36: #{tpu_custom_call.1} parent=11 // pred_fallthru
          _
      $region12: #{tpu_custom_call.1} parent=5 // pred_fallthru
        _
      %p300 = scmp.lt.s32.totalorder %s24, 4
      // Predicated region
      $region37: #{tpu_custom_call.1} parent=5 // pred_check
        %p301 = pneg %p300
      $region38: #{tpu_custom_call.1} parent=5 // pred_check_branch
        %303 = sbr.rel (%p301) target = $region40
      $region39: #{tpu_custom_call.1} parent=5 // pred_region
        // Predicated region
        $region41: #{tpu_custom_call.1} parent=39 // pred_check
          %p304 = pneg %p84
        $region42: #{tpu_custom_call.1} parent=39 // pred_check_branch
          %306 = sbr.rel (%p304) target = $region44
        $region43: #{tpu_custom_call.1} parent=39 // pred_region
          %s307 = sand.u32 %s24, 1
          %s308 = scalar_lea.sflag [#allocation13], %s307
          %s309 = sand.u32 %s74, 1
          %s310 = smul.addr %s309, 64
          %s311 = scalar_lea.vmem [#allocation12], %s310
          %s313 = ssub.s32 1024, 1024
          %314 = vsyncadd %s308, %s313
          %s315 = smul.addr %s31, 16
          %s316 = smul.addr %s315, 64
          %s317 = scalar_lea.hbm %s2, %s316
          %s318 = sshll.u32 %s311, 4
          %s319 = int_to_ptr.vmem [resolvable:$true] %s318
          %324 = dma.hbm_to_vmem [thread:$0]  %s317, 1024, %s319, %s308, 64, 64, 4
        $region44: #{tpu_custom_call.1} parent=39 // pred_fallthru
          _
        // Predicated region
        $region45: #{tpu_custom_call.1} parent=39 // pred_check
          %p325 = pneg %p110
        $region46: #{tpu_custom_call.1} parent=39 // pred_check_branch
          %327 = sbr.rel (%p325) target = $region48
        $region47: #{tpu_custom_call.1} parent=39 // pred_region
          %p328 = scmp.lt.s32.totalorder %s31, 1
          %s329 = scalar_select %p328, %s31, 1
          %s330 = scalar_lea.vmem %s3, %s329
        $region48: #{tpu_custom_call.1} parent=39 // pred_fallthru
          _
      $region40: #{tpu_custom_call.1} parent=5 // pred_fallthru
        _
      %p331 = scmp.le.s32.totalorder 1, %s24
      %p332 = scmp.lt.s32.totalorder %s24, 5
      %p333 = pnand %p331, %p332
      %p334 = pneg %p333
      // Predicated region
      $region49: #{tpu_custom_call.1} parent=5 // pred_check
        _
      $region50: #{tpu_custom_call.1} parent=5 // pred_check_branch
        %336 = sbr.rel (%p333) target = $region52
      $region51: #{tpu_custom_call.1} parent=5 // pred_region
        %s337 = ssub.s32 %s24, 1
        // Predicated region
        $region53: #{tpu_custom_call.1} parent=51 // pred_check
          %p338 = pneg %p64
        $region54: #{tpu_custom_call.1} parent=51 // pred_check_branch
          %340 = sbr.rel (%p338) target = $region56
        $region55: #{tpu_custom_call.1} parent=51 // pred_region
          %341 = dma.done [#allocation10], 4096
        $region56: #{tpu_custom_call.1} parent=51 // pred_fallthru
          _
        %s342 = sand.u32 %s29, 1
        %s343 = scalar_lea.sflag [#allocation13], %s342
        %s344 = sand.u32 %s77, 1
        %s345 = smul.addr %s344, 64
        %s346 = scalar_lea.vmem [#allocation12], %s345
        // Predicated region
        $region57: #{tpu_custom_call.1} parent=51 // pred_check
          %p347 = pneg %p90
        $region58: #{tpu_custom_call.1} parent=51 // pred_check_branch
          %349 = sbr.rel (%p347) target = $region60
        $region59: #{tpu_custom_call.1} parent=51 // pred_region
          %350 = dma.done %s343, 1024
        $region60: #{tpu_custom_call.1} parent=51 // pred_fallthru
          _
        // Predicated region
        $region61: #{tpu_custom_call.1} parent=51 // pred_check
          %p351 = pneg %p200
        $region62: #{tpu_custom_call.1} parent=51 // pred_check_branch
          %353 = sbr.rel (%p351) target = $region64
        $region63: #{tpu_custom_call.1} parent=51 // pred_region
          %354 = dma.done [#allocation13], 1024
        $region64: #{tpu_custom_call.1} parent=51 // pred_fallthru
          _
        %p355 = pneg %p64
        %p356 = pneg %p61
        %s357 = sand.u32 %s29, 1
        %s358 = scalar_lea.sflag [#allocation13], %s357
        %s359 = sand.u32 %s77, 1
        %s360 = smul.addr %s359, 64
        %s361 = scalar_lea.vmem [#allocation12], %s360
        %p362 = pneg %p90
        %p363 = pneg %p87
        %p364 = scmp.lt.s32.totalorder %s34, 1
        %s365 = scalar_select %p364, %s34, 1
        %s366 = scalar_lea.vmem %s3, %s365
        %p367 = pneg %p116
        %p368 = pneg %p113
        %p369 = pneg %p137
        %p370 = pneg %p134
        %p371 = pneg %p158
        %p372 = pneg %p155
        %p373 = pneg %p179
        %p374 = pneg %p176
        %p375 = pneg %p200
        %p376 = pneg %p197
        %p377 = pneg %p221
        %p378 = pneg %p218
        %p379 = pneg %p247
        %p380 = pneg %p244
        %s381 = sand.u32 %s234, 1
        %s382 = scalar_lea.sflag [#allocation11], %s381
        %s383 = sand.u32 %s234, 1
        %s384 = smul.addr %s383, 128
        %s385 = scalar_lea.vmem [#allocation15], %s384
        %p386 = scmp.lt.s32.totalorder %s34, 1
        %s387 = scalar_select %p386, %s34, 1
        %s388 = scalar_lea.vmem %s3, %s387
        %s389 = smul.u32 16, %s35
        %s391 = smul.u32 %s36, 256
        %s392 = smul.u32 %s35, 128
        %p393 = scmp.eq.s32.totalorder %s34, 0
        %p394 = scmp.eq.s32.totalorder %s35, 0
        %p395 = pnand %p393, %p394
        %p396 = pneg %p395
        %p397 = scmp.eq.s32.totalorder %s36, 0
        %p398 = pnand %p396, %p397
        %p399 = pneg %p398
        // Predicated region
        $region65: #{tpu_custom_call.1} parent=51 // pred_check
          _
        $region66: #{tpu_custom_call.1} parent=51 // pred_check_branch
          %401 = sbr.rel (%p398) target = $region68
        $region67: #{tpu_custom_call.1} parent=51 // pred_region
          #allocation17 [shape = 'u32[9]{0}', space=smem, size = 0x24, scoped, tag = 'DMA stride descriptor']
          %s403 = sshll.u32 1, 14
          %s404 = sxor.u32 4294967295, %s403
          %s406 = sld [smem:[#allocation0]]
          %s407 = sadd.s32 2, %s406
          %s409 = sshll.u32 7, 26
          %s410 = sxor.u32 4294967295, %s409
          %s411 = sand.u32 0, %s410
          %s412 = sshll.u32 %s407, 26
          %s413 = sor.u32 %s411, %s412
          %s414 = sshll.u32 [#allocation6], 4
          %s415 = int_to_ptr.vmem [resolvable:$true] %s414
          %418 = sst [smem:[#allocation17]] 256
          %s419 = scalar_lea.smem [#allocation17], 1
          %420 = sst [smem:[%s419]] 256
          %s421 = scalar_lea.smem [#allocation17], 2
          %422 = sst [smem:[%s421]] 2
          %s423 = scalar_lea.smem [#allocation17], 3
          %424 = sst [smem:[%s423]] 64
          %s425 = scalar_lea.smem [#allocation17], 4
          %426 = sst [smem:[%s425]] 128
          %s427 = scalar_lea.smem [#allocation17], 5
          %428 = sst [smem:[%s427]] 2
          %s429 = scalar_lea.smem [#allocation17], 6
          %430 = sst [smem:[%s429]] 128
          %s431 = scalar_lea.smem [#allocation17], 7
          %432 = sst [smem:[%s431]] 64
          %s433 = scalar_lea.smem [#allocation17], 8
          %434 = sst [smem:[%s433]] 4
          %436 = dma.general %s1, 4096, %s415, [#allocation7], [#allocation16], [#allocation17], %s413, 0
          %s437 = smul.u32 4, 32
          %s438 = smul.u32 %s437, 2
          %s439 = sshll.u32 %s438, 4
          %440 = dma.done [#allocation7], %s439
        $region68: #{tpu_custom_call.1} parent=51 // pred_fallthru
          _
        // Predicated region
        $region69: #{tpu_custom_call.1} parent=51 // pred_check
          _
        $region70: #{tpu_custom_call.1} parent=51 // pred_check_branch
          %442 = sbr.rel (%p395) target = $region72
        $region71: #{tpu_custom_call.1} parent=51 // pred_region
          %s443 = scalar_lea.vmem [#allocation9], %s391
          %v444 = vld [vmem:[%s443] sm:$0xff]
          %v445 = vld [vmem:[%s443 + $0x8] sm:$0xff]
          %v446 = vld [vmem:[%s443 + $0x10] sm:$0xff]
          %v447 = vld [vmem:[%s443 + $0x18] sm:$0xff]
          %v448 = vld [vmem:[%s443 + $0x20] sm:$0xff]
          %v449 = vld [vmem:[%s443 + $0x28] sm:$0xff]
          %v450 = vld [vmem:[%s443 + $0x30] sm:$0xff]
          %v451 = vld [vmem:[%s443 + $0x38] sm:$0xff]
          %v452 = vld [vmem:[%s443 + $0x40] sm:$0xff]
          %v453 = vld [vmem:[%s443 + $0x48] sm:$0xff]
          %v454 = vld [vmem:[%s443 + $0x50] sm:$0xff]
          %v455 = vld [vmem:[%s443 + $0x58] sm:$0xff]
          %v456 = vld [vmem:[%s443 + $0x60] sm:$0xff]
          %v457 = vld [vmem:[%s443 + $0x68] sm:$0xff]
          %v458 = vld [vmem:[%s443 + $0x70] sm:$0xff]
          %v459 = vld [vmem:[%s443 + $0x78] sm:$0xff]
          %v460 = vld [vmem:[%s443 + $0x80] sm:$0xff]
          %v461 = vld [vmem:[%s443 + $0x88] sm:$0xff]
          %v462 = vld [vmem:[%s443 + $0x90] sm:$0xff]
          %v463 = vld [vmem:[%s443 + $0x98] sm:$0xff]
          %v464 = vld [vmem:[%s443 + $0xa0] sm:$0xff]
          %v465 = vld [vmem:[%s443 + $0xa8] sm:$0xff]
          %v466 = vld [vmem:[%s443 + $0xb0] sm:$0xff]
          %v467 = vld [vmem:[%s443 + $0xb8] sm:$0xff]
          %v468 = vld [vmem:[%s443 + $0xc0] sm:$0xff]
          %v469 = vld [vmem:[%s443 + $0xc8] sm:$0xff]
          %v470 = vld [vmem:[%s443 + $0xd0] sm:$0xff]
          %v471 = vld [vmem:[%s443 + $0xd8] sm:$0xff]
          %v472 = vld [vmem:[%s443 + $0xe0] sm:$0xff]
          %v473 = vld [vmem:[%s443 + $0xe8] sm:$0xff]
          %v474 = vld [vmem:[%s443 + $0xf0] sm:$0xff]
          %v475 = vld [vmem:[%s443 + $0xf8] sm:$0xff]
          %s476 = scalar_lea.vmem [#allocation2], %s391
          %477 = vst [vmem:[%s476] sm:$0xff] %v444
          %478 = vst [vmem:[%s476 + $0x8] sm:$0xff] %v445
          %479 = vst [vmem:[%s476 + $0x10] sm:$0xff] %v446
          %480 = vst [vmem:[%s476 + $0x18] sm:$0xff] %v447
          %481 = vst [vmem:[%s476 + $0x20] sm:$0xff] %v448
          %482 = vst [vmem:[%s476 + $0x28] sm:$0xff] %v449
          %483 = vst [vmem:[%s476 + $0x30] sm:$0xff] %v450
          %484 = vst [vmem:[%s476 + $0x38] sm:$0xff] %v451
          %485 = vst [vmem:[%s476 + $0x40] sm:$0xff] %v452
          %486 = vst [vmem:[%s476 + $0x48] sm:$0xff] %v453
          %487 = vst [vmem:[%s476 + $0x50] sm:$0xff] %v454
          %488 = vst [vmem:[%s476 + $0x58] sm:$0xff] %v455
          %489 = vst [vmem:[%s476 + $0x60] sm:$0xff] %v456
          %490 = vst [vmem:[%s476 + $0x68] sm:$0xff] %v457
          %491 = vst [vmem:[%s476 + $0x70] sm:$0xff] %v458
          %492 = vst [vmem:[%s476 + $0x78] sm:$0xff] %v459
          %493 = vst [vmem:[%s476 + $0x80] sm:$0xff] %v460
          %494 = vst [vmem:[%s476 + $0x88] sm:$0xff] %v461
          %495 = vst [vmem:[%s476 + $0x90] sm:$0xff] %v462
          %496 = vst [vmem:[%s476 + $0x98] sm:$0xff] %v463
          %497 = vst [vmem:[%s476 + $0xa0] sm:$0xff] %v464
          %498 = vst [vmem:[%s476 + $0xa8] sm:$0xff] %v465
          %499 = vst [vmem:[%s476 + $0xb0] sm:$0xff] %v466
          %500 = vst [vmem:[%s476 + $0xb8] sm:$0xff] %v467
          %501 = vst [vmem:[%s476 + $0xc0] sm:$0xff] %v468
          %502 = vst [vmem:[%s476 + $0xc8] sm:$0xff] %v469
          %503 = vst [vmem:[%s476 + $0xd0] sm:$0xff] %v470
          %504 = vst [vmem:[%s476 + $0xd8] sm:$0xff] %v471
          %505 = vst [vmem:[%s476 + $0xe0] sm:$0xff] %v472
          %506 = vst [vmem:[%s476 + $0xe8] sm:$0xff] %v473
          %507 = vst [vmem:[%s476 + $0xf0] sm:$0xff] %v474
          %508 = vst [vmem:[%s476 + $0xf8] sm:$0xff] %v475
          %v509 = vpack.c.bf16 %v445, %v444
          %v510 = vpack.c.bf16 %v447, %v446
          %v511 = vpack.c.bf16 %v449, %v448
          %v512 = vpack.c.bf16 %v451, %v450
          %v513 = vpack.c.bf16 %v453, %v452
          %v514 = vpack.c.bf16 %v455, %v454
          %v515 = vpack.c.bf16 %v457, %v456
          %v516 = vpack.c.bf16 %v459, %v458
          %v517 = vpack.c.bf16 %v461, %v460
          %v518 = vpack.c.bf16 %v463, %v462
          %v519 = vpack.c.bf16 %v465, %v464
          %v520 = vpack.c.bf16 %v467, %v466
          %v521 = vpack.c.bf16 %v469, %v468
          %v522 = vpack.c.bf16 %v471, %v470
          %v523 = vpack.c.bf16 %v473, %v472
          %v524 = vpack.c.bf16 %v475, %v474
          %s525 = sshra.s32 %s391, 4
          %s526 = sand.u32 %s391, 15
          %s527 = smul.addr %s525, 8
          %s528 = scalar_lea.vmem [#allocation3], %s527
          %529 = vst [vmem:[%s528] sm:$0xff] %v509
          %530 = vst [vmem:[%s528 + $0x8] sm:$0xff] %v510
          %531 = vst [vmem:[%s528 + $0x10] sm:$0xff] %v511
          %532 = vst [vmem:[%s528 + $0x18] sm:$0xff] %v512
          %533 = vst [vmem:[%s528 + $0x20] sm:$0xff] %v513
          %534 = vst [vmem:[%s528 + $0x28] sm:$0xff] %v514
          %535 = vst [vmem:[%s528 + $0x30] sm:$0xff] %v515
          %536 = vst [vmem:[%s528 + $0x38] sm:$0xff] %v516
          %537 = vst [vmem:[%s528 + $0x40] sm:$0xff] %v517
          %538 = vst [vmem:[%s528 + $0x48] sm:$0xff] %v518
          %539 = vst [vmem:[%s528 + $0x50] sm:$0xff] %v519
          %540 = vst [vmem:[%s528 + $0x58] sm:$0xff] %v520
          %541 = vst [vmem:[%s528 + $0x60] sm:$0xff] %v521
          %542 = vst [vmem:[%s528 + $0x68] sm:$0xff] %v522
          %543 = vst [vmem:[%s528 + $0x70] sm:$0xff] %v523
          %544 = vst [vmem:[%s528 + $0x78] sm:$0xff] %v524
        $region72: #{tpu_custom_call.1} parent=51 // pred_fallthru
          _
        // Predicated region
        $region73: #{tpu_custom_call.1} parent=51 // pred_check
          %p545 = pneg %p394
        $region74: #{tpu_custom_call.1} parent=51 // pred_check_branch
          %547 = sbr.rel (%p545) target = $region76
        $region75: #{tpu_custom_call.1} parent=51 // pred_region
          %s548 = sshra.s32 %s391, 4
          %s549 = sand.u32 %s391, 15
          %s550 = smul.addr %s548, 8
          %s551 = scalar_lea.vmem [#allocation3], %s550
          %v552 = vld [vmem:[%s551] sm:$0xff]
          %v553 = vld [vmem:[%s551 + $0x8] sm:$0xff]
          %v554 = vld [vmem:[%s551 + $0x10] sm:$0xff]
          %v555 = vld [vmem:[%s551 + $0x18] sm:$0xff]
          %v556 = vld [vmem:[%s551 + $0x20] sm:$0xff]
          %v557 = vld [vmem:[%s551 + $0x28] sm:$0xff]
          %v558 = vld [vmem:[%s551 + $0x30] sm:$0xff]
          %v559 = vld [vmem:[%s551 + $0x38] sm:$0xff]
          %v560 = vld [vmem:[%s551 + $0x40] sm:$0xff]
          %v561 = vld [vmem:[%s551 + $0x48] sm:$0xff]
          %v562 = vld [vmem:[%s551 + $0x50] sm:$0xff]
          %v563 = vld [vmem:[%s551 + $0x58] sm:$0xff]
          %v564 = vld [vmem:[%s551 + $0x60] sm:$0xff]
          %v565 = vld [vmem:[%s551 + $0x68] sm:$0xff]
          %v566 = vld [vmem:[%s551 + $0x70] sm:$0xff]
          %v567 = vld [vmem:[%s551 + $0x78] sm:$0xff]
          %v568 = vld [vmem:[%s346] sm:$0xf]
          %v569 = vld [vmem:[%s346 + $0x4] sm:$0xf]
          %v570 = vld [vmem:[%s346 + $0x8] sm:$0xf]
          %v571 = vld [vmem:[%s346 + $0xc] sm:$0xf]
          %v572 = vld [vmem:[%s346 + $0x10] sm:$0xf]
          %v573 = vld [vmem:[%s346 + $0x14] sm:$0xf]
          %v574 = vld [vmem:[%s346 + $0x18] sm:$0xf]
          %v575 = vld [vmem:[%s346 + $0x1c] sm:$0xf]
          %v576 = vld [vmem:[%s346 + $0x20] sm:$0xf]
          %v577 = vld [vmem:[%s346 + $0x24] sm:$0xf]
          %v578 = vld [vmem:[%s346 + $0x28] sm:$0xf]
          %v579 = vld [vmem:[%s346 + $0x2c] sm:$0xf]
          %v580 = vld [vmem:[%s346 + $0x30] sm:$0xf]
          %v581 = vld [vmem:[%s346 + $0x34] sm:$0xf]
          %v582 = vld [vmem:[%s346 + $0x38] sm:$0xf]
          %v583 = vld [vmem:[%s346 + $0x3c] sm:$0xf]
          %v600 = vunpack.c.l.b16 %v568
          %v601 = vunpack.c.l.b16 %v569
          %v602 = vunpack.c.l.b16 %v570
          %v603 = vunpack.c.l.b16 %v571
          %v604 = vunpack.c.l.b16 %v572
          %v605 = vunpack.c.l.b16 %v573
          %v606 = vunpack.c.l.b16 %v574
          %v607 = vunpack.c.l.b16 %v575
          %v608 = vunpack.c.l.b16 %v576
          %v609 = vunpack.c.l.b16 %v577
          %v610 = vunpack.c.l.b16 %v578
          %v611 = vunpack.c.l.b16 %v579
          %v612 = vunpack.c.l.b16 %v580
          %v613 = vunpack.c.l.b16 %v581
          %v614 = vunpack.c.l.b16 %v582
          %v615 = vunpack.c.l.b16 %v583
          %v616 = vpack.c.b16 %v601, %v600
          %v617 = vpack.c.b16 %v603, %v602
          %v618 = vpack.c.b16 %v605, %v604
          %v619 = vpack.c.b16 %v607, %v606
          %v620 = vpack.c.b16 %v609, %v608
          %v621 = vpack.c.b16 %v611, %v610
          %v622 = vpack.c.b16 %v613, %v612
          %v623 = vpack.c.b16 %v615, %v614
          %632 = vmatprep.subr.bf16.mxu0 0
          %633 = vmatpush1.bf16.msra.mxu0 %v616
          %634 = vmatprep.subr.bf16.mxu0 0
          %635 = vmatpush1.bf16.msra.mxu0 %v617
          %636 = vmatprep.subr.bf16.mxu0 0
          %637 = vmatpush1.bf16.msra.mxu0 %v618
          %638 = vmatprep.subr.bf16.mxu0 0
          %639 = vmatpush1.bf16.msra.mxu0 %v619
          %640 = vmatprep.subr.bf16.mxu0 0
          %641 = vmatpush1.bf16.msra.mxu0 %v620
          %642 = vmatprep.subr.bf16.mxu0 0
          %643 = vmatpush1.bf16.msra.mxu0 %v621
          %644 = vmatprep.subr.bf16.mxu0 0
          %645 = vmatpush1.bf16.msra.mxu0 %v622
          %646 = vmatprep.subr.bf16.mxu0 0
          %647 = vmatpush1.bf16.msra.mxu0 %v623
          %648 = vmatprep.subr.bf16.mxu0 0
          %649 = vmatpush1.bf16.msra.mxu0 0
          %650 = vmatprep.subr.bf16.mxu0 0
          %651 = vmatpush1.bf16.msra.mxu0 0
          %652 = vmatprep.subr.bf16.mxu0 0
          %653 = vmatpush1.bf16.msra.mxu0 0
          %654 = vmatprep.subr.bf16.mxu0 0
          %655 = vmatpush1.bf16.msra.mxu0 0
          %656 = vmatprep.subr.bf16.mxu0 0
          %657 = vmatpush1.bf16.msra.mxu0 0
          %658 = vmatprep.subr.bf16.mxu0 0
          %659 = vmatpush1.bf16.msra.mxu0 0
          %660 = vmatprep.subr.bf16.mxu0 0
          %661 = vmatpush1.bf16.msra.mxu0 0
          %662 = vmatprep.subr.bf16.mxu0 0
          %663 = vmatpush1.bf16.msra.mxu0 0
          %664 = vmatprep.mubr.bf16.mxu0 0
          %665 = vmatmul.mubr.bf16.gmra.mrb[0].mxu0 %v552
          %v666 = vpop.f32.mrb[0].mxu0
          %v667 = vadd.f32 0.0, %v666
          %v668 = vpop.f32.mrb[0].mxu0
          %v669 = vpop.f32.mrb[0].mxu0
          %v670 = vadd.f32 0.0, %v669
          %v671 = vpop.f32.mrb[0].mxu0
          %672 = vmatprep.mubr.bf16.mxu0 0
          %673 = vmatmul.mubr.bf16.gmra.mrb[0].mxu0 %v553
          %v674 = vpop.f32.mrb[0].mxu0
          %v675 = vadd.f32 0.0, %v674
          %v676 = vpop.f32.mrb[0].mxu0
          %v677 = vpop.f32.mrb[0].mxu0
          %v678 = vadd.f32 0.0, %v677
          %v679 = vpop.f32.mrb[0].mxu0
          %680 = vmatprep.mubr.bf16.mxu0 0
          %681 = vmatmul.mubr.bf16.gmra.mrb[0].mxu0 %v554
          %v682 = vpop.f32.mrb[0].mxu0
          %v683 = vadd.f32 0.0, %v682
          %v684 = vpop.f32.mrb[0].mxu0
          %v685 = vpop.f32.mrb[0].mxu0
          %v686 = vadd.f32 0.0, %v685
          %v687 = vpop.f32.mrb[0].mxu0
          %688 = vmatprep.mubr.bf16.mxu0 0
          %689 = vmatmul.mubr.bf16.gmra.mrb[0].mxu0 %v555
          %v690 = vpop.f32.mrb[0].mxu0
          %v691 = vadd.f32 0.0, %v690
          %v692 = vpop.f32.mrb[0].mxu0
          %v693 = vpop.f32.mrb[0].mxu0
          %v694 = vadd.f32 0.0, %v693
          %v695 = vpop.f32.mrb[0].mxu0
          %696 = vmatprep.mubr.bf16.mxu0 0
          %697 = vmatmul.mubr.bf16.gmra.mrb[0].mxu0 %v556
          %v698 = vpop.f32.mrb[0].mxu0
          %v699 = vadd.f32 0.0, %v698
          %v700 = vpop.f32.mrb[0].mxu0
          %v701 = vpop.f32.mrb[0].mxu0
          %v702 = vadd.f32 0.0, %v701
          %v703 = vpop.f32.mrb[0].mxu0
          %704 = vmatprep.mubr.bf16.mxu0 0
          %705 = vmatmul.mubr.bf16.gmra.mrb[0].mxu0 %v557
          %v706 = vpop.f32.mrb[0].mxu0
          %v707 = vadd.f32 0.0, %v706
          %v708 = vpop.f32.mrb[0].mxu0
          %v709 = vpop.f32.mrb[0].mxu0
          %v710 = vadd.f32 0.0, %v709
          %v711 = vpop.f32.mrb[0].mxu0
          %712 = vmatprep.mubr.bf16.mxu0 0
          %713 = vmatmul.mubr.bf16.gmra.mrb[0].mxu0 %v558
          %v714 = vpop.f32.mrb[0].mxu0
          %v715 = vadd.f32 0.0, %v714
          %v716 = vpop.f32.mrb[0].mxu0
          %v717 = vpop.f32.mrb[0].mxu0
          %v718 = vadd.f32 0.0, %v717
          %v719 = vpop.f32.mrb[0].mxu0
          %720 = vmatprep.mubr.bf16.mxu0 0
          %721 = vmatmul.mubr.bf16.gmra.mrb[0].mxu0 %v559
          %v722 = vpop.f32.mrb[0].mxu0
          %v723 = vadd.f32 0.0, %v722
          %v724 = vpop.f32.mrb[0].mxu0
          %v725 = vpop.f32.mrb[0].mxu0
          %v726 = vadd.f32 0.0, %v725
          %v727 = vpop.f32.mrb[0].mxu0
          %728 = vmatprep.mubr.bf16.mxu0 0
          %729 = vmatmul.mubr.bf16.gmra.mrb[0].mxu0 %v560
          %v730 = vpop.f32.mrb[0].mxu0
          %v731 = vadd.f32 0.0, %v730
          %v732 = vpop.f32.mrb[0].mxu0
          %v733 = vpop.f32.mrb[0].mxu0
          %v734 = vadd.f32 0.0, %v733
          %v735 = vpop.f32.mrb[0].mxu0
          %736 = vmatprep.mubr.bf16.mxu0 0
          %737 = vmatmul.mubr.bf16.gmra.mrb[0].mxu0 %v561
          %v738 = vpop.f32.mrb[0].mxu0
          %v739 = vadd.f32 0.0, %v738
          %v740 = vpop.f32.mrb[0].mxu0
          %v741 = vpop.f32.mrb[0].mxu0
          %v742 = vadd.f32 0.0, %v741
          %v743 = vpop.f32.mrb[0].mxu0
          %744 = vmatprep.mubr.bf16.mxu0 0
          %745 = vmatmul.mubr.bf16.gmra.mrb[0].mxu0 %v562
          %v746 = vpop.f32.mrb[0].mxu0
          %v747 = vadd.f32 0.0, %v746
          %v748 = vpop.f32.mrb[0].mxu0
          %v749 = vpop.f32.mrb[0].mxu0
          %v750 = vadd.f32 0.0, %v749
          %v751 = vpop.f32.mrb[0].mxu0
          %752 = vmatprep.mubr.bf16.mxu0 0
          %753 = vmatmul.mubr.bf16.gmra.mrb[0].mxu0 %v563
          %v754 = vpop.f32.mrb[0].mxu0
          %v755 = vadd.f32 0.0, %v754
          %v756 = vpop.f32.mrb[0].mxu0
          %v757 = vpop.f32.mrb[0].mxu0
          %v758 = vadd.f32 0.0, %v757
          %v759 = vpop.f32.mrb[0].mxu0
          %760 = vmatprep.mubr.bf16.mxu0 0
          %761 = vmatmul.mubr.bf16.gmra.mrb[0].mxu0 %v564
          %v762 = vpop.f32.mrb[0].mxu0
          %v763 = vadd.f32 0.0, %v762
          %v764 = vpop.f32.mrb[0].mxu0
          %v765 = vpop.f32.mrb[0].mxu0
          %v766 = vadd.f32 0.0, %v765
          %v767 = vpop.f32.mrb[0].mxu0
          %768 = vmatprep.mubr.bf16.mxu0 0
          %769 = vmatmul.mubr.bf16.gmra.mrb[0].mxu0 %v565
          %v770 = vpop.f32.mrb[0].mxu0
          %v771 = vadd.f32 0.0, %v770
          %v772 = vpop.f32.mrb[0].mxu0
          %v773 = vpop.f32.mrb[0].mxu0
          %v774 = vadd.f32 0.0, %v773
          %v775 = vpop.f32.mrb[0].mxu0
          %776 = vmatprep.mubr.bf16.mxu0 0
          %777 = vmatmul.mubr.bf16.gmra.mrb[0].mxu0 %v566
          %v778 = vpop.f32.mrb[0].mxu0
          %v779 = vadd.f32 0.0, %v778
          %v780 = vpop.f32.mrb[0].mxu0
          %v781 = vpop.f32.mrb[0].mxu0
          %v782 = vadd.f32 0.0, %v781
          %v783 = vpop.f32.mrb[0].mxu0
          %784 = vmatprep.mubr.bf16.mxu0 0
          %785 = vmatmul.mubr.bf16.gmra.mrb[0].mxu0 %v567
          %v786 = vpop.f32.mrb[0].mxu0
          %v787 = vadd.f32 0.0, %v786
          %v788 = vpop.f32.mrb[0].mxu0
          %v789 = vpop.f32.mrb[0].mxu0
          %v790 = vadd.f32 0.0, %v789
          %v791 = vpop.f32.mrb[0].mxu0
          %792 = vdwg.mxu0
          %v793 = vpack.c.bf16 %v670, %v667
          %v794 = vpack.c.bf16 %v678, %v675
          %v795 = vpack.c.bf16 %v686, %v683
          %v796 = vpack.c.bf16 %v694, %v691
          %v797 = vpack.c.bf16 %v702, %v699
          %v798 = vpack.c.bf16 %v710, %v707
          %v799 = vpack.c.bf16 %v718, %v715
          %v800 = vpack.c.bf16 %v726, %v723
          %v801 = vpack.c.bf16 %v734, %v731
          %v802 = vpack.c.bf16 %v742, %v739
          %v803 = vpack.c.bf16 %v750, %v747
          %v804 = vpack.c.bf16 %v758, %v755
          %v805 = vpack.c.bf16 %v766, %v763
          %v806 = vpack.c.bf16 %v774, %v771
          %v807 = vpack.c.bf16 %v782, %v779
          %v808 = vpack.c.bf16 %v790, %v787
          %s809 = smul.addr %s548, 8
          %s810 = scalar_lea.vmem [#allocation4], %s809
          %811 = vst [vmem:[%s810] sm:$0xff] %v793
          %812 = vst [vmem:[%s810 + $0x8] sm:$0xff] %v794
          %813 = vst [vmem:[%s810 + $0x10] sm:$0xff] %v795
          %814 = vst [vmem:[%s810 + $0x18] sm:$0xff] %v796
          %815 = vst [vmem:[%s810 + $0x20] sm:$0xff] %v797
          %816 = vst [vmem:[%s810 + $0x28] sm:$0xff] %v798
          %817 = vst [vmem:[%s810 + $0x30] sm:$0xff] %v799
          %818 = vst [vmem:[%s810 + $0x38] sm:$0xff] %v800
          %819 = vst [vmem:[%s810 + $0x40] sm:$0xff] %v801
          %820 = vst [vmem:[%s810 + $0x48] sm:$0xff] %v802
          %821 = vst [vmem:[%s810 + $0x50] sm:$0xff] %v803
          %822 = vst [vmem:[%s810 + $0x58] sm:$0xff] %v804
          %823 = vst [vmem:[%s810 + $0x60] sm:$0xff] %v805
          %824 = vst [vmem:[%s810 + $0x68] sm:$0xff] %v806
          %825 = vst [vmem:[%s810 + $0x70] sm:$0xff] %v807
          %826 = vst [vmem:[%s810 + $0x78] sm:$0xff] %v808
        $region76: #{tpu_custom_call.1} parent=51 // pred_fallthru
          _
        // Predicated region
        $region77: #{tpu_custom_call.1} parent=51 // pred_check
          %p827 = pneg %p397
        $region78: #{tpu_custom_call.1} parent=51 // pred_check_branch
          %829 = sbr.rel (%p827) target = $region80
        $region79: #{tpu_custom_call.1} parent=51 // pred_region
          %830 = vst [vmem:[#allocation5] sm:$0xff] 0.0
          %831 = vst [vmem:[#allocation5 + $0x8] sm:$0xff] 0.0
          %832 = vst [vmem:[#allocation5 + $0x10] sm:$0xff] 0.0
          %833 = vst [vmem:[#allocation5 + $0x18] sm:$0xff] 0.0
          %834 = vst [vmem:[#allocation5 + $0x20] sm:$0xff] 0.0
          %835 = vst [vmem:[#allocation5 + $0x28] sm:$0xff] 0.0
          %836 = vst [vmem:[#allocation5 + $0x30] sm:$0xff] 0.0
          %837 = vst [vmem:[#allocation5 + $0x38] sm:$0xff] 0.0
          %838 = vst [vmem:[#allocation5 + $0x40] sm:$0xff] 0.0
          %839 = vst [vmem:[#allocation5 + $0x48] sm:$0xff] 0.0
          %840 = vst [vmem:[#allocation5 + $0x50] sm:$0xff] 0.0
          %841 = vst [vmem:[#allocation5 + $0x58] sm:$0xff] 0.0
          %842 = vst [vmem:[#allocation5 + $0x60] sm:$0xff] 0.0
          %843 = vst [vmem:[#allocation5 + $0x68] sm:$0xff] 0.0
          %844 = vst [vmem:[#allocation5 + $0x70] sm:$0xff] 0.0
          %845 = vst [vmem:[#allocation5 + $0x78] sm:$0xff] 0.0
        $region80: #{tpu_custom_call.1} parent=51 // pred_fallthru
          _
        %s846 = sshra.s32 %s391, 7
        %s847 = sand.u32 %s391, 127
        %s848 = sshra.s32 %s392, 4
        %s849 = sand.u32 %s392, 15
        %s850 = smul.u32 %s848, 2
        %s851 = sadd.s32 %s846, %s850
        %s852 = smul.addr %s851, 8
        %s853 = scalar_lea.vmem [#allocation6], %s852
        %v854 = vld [vmem:[%s853] sm:$0xff]
        %v855 = vld [vmem:[%s853 + $0x8] sm:$0xff]
        %v856 = vld [vmem:[%s853 + $0x10] sm:$0xff]
        %v857 = vld [vmem:[%s853 + $0x18] sm:$0xff]
        %v858 = vld [vmem:[%s853 + $0x20] sm:$0xff]
        %v859 = vld [vmem:[%s853 + $0x28] sm:$0xff]
        %v860 = vld [vmem:[%s853 + $0x30] sm:$0xff]
        %v861 = vld [vmem:[%s853 + $0x38] sm:$0xff]
        %v862 = vld [vmem:[%s853 + $0x40] sm:$0xff]
        %v863 = vld [vmem:[%s853 + $0x48] sm:$0xff]
        %v864 = vld [vmem:[%s853 + $0x50] sm:$0xff]
        %v865 = vld [vmem:[%s853 + $0x58] sm:$0xff]
        %v866 = vld [vmem:[%s853 + $0x60] sm:$0xff]
        %v867 = vld [vmem:[%s853 + $0x68] sm:$0xff]
        %v868 = vld [vmem:[%s853 + $0x70] sm:$0xff]
        %v869 = vld [vmem:[%s853 + $0x78] sm:$0xff]
        %v870 = vld [vmem:[#allocation5] sm:$0xff]
        %v871 = vld [vmem:[#allocation5 + $0x8] sm:$0xff]
        %v872 = vld [vmem:[#allocation5 + $0x10] sm:$0xff]
        %v873 = vld [vmem:[#allocation5 + $0x18] sm:$0xff]
        %v874 = vld [vmem:[#allocation5 + $0x20] sm:$0xff]
        %v875 = vld [vmem:[#allocation5 + $0x28] sm:$0xff]
        %v876 = vld [vmem:[#allocation5 + $0x30] sm:$0xff]
        %v877 = vld [vmem:[#allocation5 + $0x38] sm:$0xff]
        %v878 = vld [vmem:[#allocation5 + $0x40] sm:$0xff]
        %v879 = vld [vmem:[#allocation5 + $0x48] sm:$0xff]
        %v880 = vld [vmem:[#allocation5 + $0x50] sm:$0xff]
        %v881 = vld [vmem:[#allocation5 + $0x58] sm:$0xff]
        %v882 = vld [vmem:[#allocation5 + $0x60] sm:$0xff]
        %v883 = vld [vmem:[#allocation5 + $0x68] sm:$0xff]
        %v884 = vld [vmem:[#allocation5 + $0x70] sm:$0xff]
        %v885 = vld [vmem:[#allocation5 + $0x78] sm:$0xff]
        %s886 = sshra.s32 %s391, 4
        %s887 = sand.u32 %s391, 15
        %s888 = smul.addr %s886, 8
        %s889 = scalar_lea.vmem [#allocation4], %s888
        %v890 = vld [vmem:[%s889] sm:$0xff]
        %v891 = vld [vmem:[%s889 + $0x8] sm:$0xff]
        %v892 = vld [vmem:[%s889 + $0x10] sm:$0xff]
        %v893 = vld [vmem:[%s889 + $0x18] sm:$0xff]
        %v894 = vld [vmem:[%s889 + $0x20] sm:$0xff]
        %v895 = vld [vmem:[%s889 + $0x28] sm:$0xff]
        %v896 = vld [vmem:[%s889 + $0x30] sm:$0xff]
        %v897 = vld [vmem:[%s889 + $0x38] sm:$0xff]
        %v898 = vld [vmem:[%s889 + $0x40] sm:$0xff]
        %v899 = vld [vmem:[%s889 + $0x48] sm:$0xff]
        %v900 = vld [vmem:[%s889 + $0x50] sm:$0xff]
        %v901 = vld [vmem:[%s889 + $0x58] sm:$0xff]
        %v902 = vld [vmem:[%s889 + $0x60] sm:$0xff]
        %v903 = vld [vmem:[%s889 + $0x68] sm:$0xff]
        %v904 = vld [vmem:[%s889 + $0x70] sm:$0xff]
        %v905 = vld [vmem:[%s889 + $0x78] sm:$0xff]
        %906 = vmatprep.subr.bf16.mxu0 0
        %907 = vmatpush1.bf16.msra.mxu0 %v890
        %908 = vmatprep.subr.bf16.mxu0 0
        %909 = vmatpush1.bf16.msra.mxu0 %v891
        %910 = vmatprep.subr.bf16.mxu0 0
        %911 = vmatpush1.bf16.msra.mxu0 %v892
        %912 = vmatprep.subr.bf16.mxu0 0
        %913 = vmatpush1.bf16.msra.mxu0 %v893
        %914 = vmatprep.subr.bf16.mxu0 0
        %915 = vmatpush1.bf16.msra.mxu0 %v894
        %916 = vmatprep.subr.bf16.mxu0 0
        %917 = vmatpush1.bf16.msra.mxu0 %v895
        %918 = vmatprep.subr.bf16.mxu0 0
        %919 = vmatpush1.bf16.msra.mxu0 %v896
        %920 = vmatprep.subr.bf16.mxu0 0
        %921 = vmatpush1.bf16.msra.mxu0 %v897
        %922 = vmatprep.subr.bf16.mxu0 0
        %923 = vmatpush1.bf16.msra.mxu0 %v898
        %924 = vmatprep.subr.bf16.mxu0 0
        %925 = vmatpush1.bf16.msra.mxu0 %v899
        %926 = vmatprep.subr.bf16.mxu0 0
        %927 = vmatpush1.bf16.msra.mxu0 %v900
        %928 = vmatprep.subr.bf16.mxu0 0
        %929 = vmatpush1.bf16.msra.mxu0 %v901
        %930 = vmatprep.subr.bf16.mxu0 0
        %931 = vmatpush1.bf16.msra.mxu0 %v902
        %932 = vmatprep.subr.bf16.mxu0 0
        %933 = vmatpush1.bf16.msra.mxu0 %v903
        %934 = vmatprep.subr.bf16.mxu0 0
        %935 = vmatpush1.bf16.msra.mxu0 %v904
        %936 = vmatprep.subr.bf16.mxu0 0
        %937 = vmatpush1.bf16.msra.mxu0 %v905
        %938 = vmatprep.mubr.bf16.mxu0 %v855
        %939 = vmatmul.mubr.bf16.gmra.mrb[0].mxu0 %v854
        %v940 = vpop.f32.mrb[0].mxu0
        %v941 = vadd.f32 0.0, %v940
        %v942 = vpop.f32.mrb[0].mxu0
        %v943 = vpop.f32.mrb[0].mxu0
        %v944 = vadd.f32 0.0, %v943
        %v945 = vpop.f32.mrb[0].mxu0
        %946 = vmatprep.mubr.bf16.mxu0 %v857
        %947 = vmatmul.mubr.bf16.gmra.mrb[0].mxu0 %v856
        %v948 = vpop.f32.mrb[0].mxu0
        %v949 = vadd.f32 0.0, %v948
        %v950 = vpop.f32.mrb[0].mxu0
        %v951 = vpop.f32.mrb[0].mxu0
        %v952 = vadd.f32 0.0, %v951
        %v953 = vpop.f32.mrb[0].mxu0
        %954 = vmatprep.mubr.bf16.mxu0 %v859
        %955 = vmatmul.mubr.bf16.gmra.mrb[0].mxu0 %v858
        %v956 = vpop.f32.mrb[0].mxu0
        %v957 = vadd.f32 0.0, %v956
        %v958 = vpop.f32.mrb[0].mxu0
        %v959 = vpop.f32.mrb[0].mxu0
        %v960 = vadd.f32 0.0, %v959
        %v961 = vpop.f32.mrb[0].mxu0
        %962 = vmatprep.mubr.bf16.mxu0 %v861
        %963 = vmatmul.mubr.bf16.gmra.mrb[0].mxu0 %v860
        %v964 = vpop.f32.mrb[0].mxu0
        %v965 = vadd.f32 0.0, %v964
        %v966 = vpop.f32.mrb[0].mxu0
        %v967 = vpop.f32.mrb[0].mxu0
        %v968 = vadd.f32 0.0, %v967
        %v969 = vpop.f32.mrb[0].mxu0
        %970 = vmatprep.mubr.bf16.mxu0 %v863
        %971 = vmatmul.mubr.bf16.gmra.mrb[0].mxu0 %v862
        %v972 = vpop.f32.mrb[0].mxu0
        %v973 = vadd.f32 0.0, %v972
        %v974 = vpop.f32.mrb[0].mxu0
        %v975 = vpop.f32.mrb[0].mxu0
        %v976 = vadd.f32 0.0, %v975
        %v977 = vpop.f32.mrb[0].mxu0
        %978 = vmatprep.mubr.bf16.mxu0 %v865
        %979 = vmatmul.mubr.bf16.gmra.mrb[0].mxu0 %v864
        %v980 = vpop.f32.mrb[0].mxu0
        %v981 = vadd.f32 0.0, %v980
        %v982 = vpop.f32.mrb[0].mxu0
        %v983 = vpop.f32.mrb[0].mxu0
        %v984 = vadd.f32 0.0, %v983
        %v985 = vpop.f32.mrb[0].mxu0
        %986 = vmatprep.mubr.bf16.mxu0 %v867
        %987 = vmatmul.mubr.bf16.gmra.mrb[0].mxu0 %v866
        %v988 = vpop.f32.mrb[0].mxu0
        %v989 = vadd.f32 0.0, %v988
        %v990 = vpop.f32.mrb[0].mxu0
        %v991 = vpop.f32.mrb[0].mxu0
        %v992 = vadd.f32 0.0, %v991
        %v993 = vpop.f32.mrb[0].mxu0
        %994 = vmatprep.mubr.bf16.mxu0 %v869
        %995 = vmatmul.mubr.bf16.gmra.mrb[0].mxu0 %v868
        %v996 = vpop.f32.mrb[0].mxu0
        %v997 = vadd.f32 0.0, %v996
        %v998 = vpop.f32.mrb[0].mxu0
        %v999 = vpop.f32.mrb[0].mxu0
        %v1000 = vadd.f32 0.0, %v999
        %v1001 = vpop.f32.mrb[0].mxu0
        %1002 = vdwg.mxu0
        %v1003 = vadd.f32 %v870, %v941
        %v1004 = vadd.f32 %v871, %v944
        %v1005 = vadd.f32 %v872, %v949
        %v1006 = vadd.f32 %v873, %v952
        %v1007 = vadd.f32 %v874, %v957
        %v1008 = vadd.f32 %v875, %v960
        %v1009 = vadd.f32 %v876, %v965
        %v1010 = vadd.f32 %v877, %v968
        %v1011 = vadd.f32 %v878, %v973
        %v1012 = vadd.f32 %v879, %v976
        %v1013 = vadd.f32 %v880, %v981
        %v1014 = vadd.f32 %v881, %v984
        %v1015 = vadd.f32 %v882, %v989
        %v1016 = vadd.f32 %v883, %v992
        %v1017 = vadd.f32 %v884, %v997
        %v1018 = vadd.f32 %v885, %v1000
        %1019 = vst [vmem:[#allocation5] sm:$0xff] %v1003
        %1020 = vst [vmem:[#allocation5 + $0x8] sm:$0xff] %v1004
        %1021 = vst [vmem:[#allocation5 + $0x10] sm:$0xff] %v1005
        %1022 = vst [vmem:[#allocation5 + $0x18] sm:$0xff] %v1006
        %1023 = vst [vmem:[#allocation5 + $0x20] sm:$0xff] %v1007
        %1024 = vst [vmem:[#allocation5 + $0x28] sm:$0xff] %v1008
        %1025 = vst [vmem:[#allocation5 + $0x30] sm:$0xff] %v1009
        %1026 = vst [vmem:[#allocation5 + $0x38] sm:$0xff] %v1010
        %1027 = vst [vmem:[#allocation5 + $0x40] sm:$0xff] %v1011
        %1028 = vst [vmem:[#allocation5 + $0x48] sm:$0xff] %v1012
        %1029 = vst [vmem:[#allocation5 + $0x50] sm:$0xff] %v1013
        %1030 = vst [vmem:[#allocation5 + $0x58] sm:$0xff] %v1014
        %1031 = vst [vmem:[#allocation5 + $0x60] sm:$0xff] %v1015
        %1032 = vst [vmem:[#allocation5 + $0x68] sm:$0xff] %v1016
        %1033 = vst [vmem:[#allocation5 + $0x70] sm:$0xff] %v1017
        %1034 = vst [vmem:[#allocation5 + $0x78] sm:$0xff] %v1018
        // Predicated region
        $region81: #{tpu_custom_call.1} parent=51 // pred_check
          %p1035 = pneg %p397
        $region82: #{tpu_custom_call.1} parent=51 // pred_check_branch
          %1037 = sbr.rel (%p1035) target = $region84
        $region83: #{tpu_custom_call.1} parent=51 // pred_region
          %v1038 = vld [vmem:[#allocation5] sm:$0xff]
          %v1039 = vld [vmem:[#allocation5 + $0x8] sm:$0xff]
          %v1040 = vld [vmem:[#allocation5 + $0x10] sm:$0xff]
          %v1041 = vld [vmem:[#allocation5 + $0x18] sm:$0xff]
          %v1042 = vld [vmem:[#allocation5 + $0x20] sm:$0xff]
          %v1043 = vld [vmem:[#allocation5 + $0x28] sm:$0xff]
          %v1044 = vld [vmem:[#allocation5 + $0x30] sm:$0xff]
          %v1045 = vld [vmem:[#allocation5 + $0x38] sm:$0xff]
          %v1046 = vld [vmem:[#allocation5 + $0x40] sm:$0xff]
          %v1047 = vld [vmem:[#allocation5 + $0x48] sm:$0xff]
          %v1048 = vld [vmem:[#allocation5 + $0x50] sm:$0xff]
          %v1049 = vld [vmem:[#allocation5 + $0x58] sm:$0xff]
          %v1050 = vld [vmem:[#allocation5 + $0x60] sm:$0xff]
          %v1051 = vld [vmem:[#allocation5 + $0x68] sm:$0xff]
          %v1052 = vld [vmem:[#allocation5 + $0x70] sm:$0xff]
          %v1053 = vld [vmem:[#allocation5 + $0x78] sm:$0xff]
          %v1054 = vld [vmem:[%s388] sm:$0x1]
          %v1056 = vlaneseq
          %v1057 = vshrl.u32 %v1056, 7
          %v1058 = vsub.s32 0, %v1057
          %v1059 = vrot.slane %v1054, %v1058
          %v1061 = vadd.f32 %v1038, %v1059
          %v1062 = vadd.f32 %v1039, %v1059
          %v1063 = vadd.f32 %v1040, %v1059
          %v1064 = vadd.f32 %v1041, %v1059
          %v1065 = vadd.f32 %v1042, %v1059
          %v1066 = vadd.f32 %v1043, %v1059
          %v1067 = vadd.f32 %v1044, %v1059
          %v1068 = vadd.f32 %v1045, %v1059
          %v1069 = vadd.f32 %v1046, %v1059
          %v1070 = vadd.f32 %v1047, %v1059
          %v1071 = vadd.f32 %v1048, %v1059
          %v1072 = vadd.f32 %v1049, %v1059
          %v1073 = vadd.f32 %v1050, %v1059
          %v1074 = vadd.f32 %v1051, %v1059
          %v1075 = vadd.f32 %v1052, %v1059
          %v1076 = vadd.f32 %v1053, %v1059
          %s1077 = scalar_lea.vmem [#allocation2], %s392
          %v1078 = vld [vmem:[%s1077] sm:$0xff]
          %v1079 = vld [vmem:[%s1077 + $0x8] sm:$0xff]
          %v1080 = vld [vmem:[%s1077 + $0x10] sm:$0xff]
          %v1081 = vld [vmem:[%s1077 + $0x18] sm:$0xff]
          %v1082 = vld [vmem:[%s1077 + $0x20] sm:$0xff]
          %v1083 = vld [vmem:[%s1077 + $0x28] sm:$0xff]
          %v1084 = vld [vmem:[%s1077 + $0x30] sm:$0xff]
          %v1085 = vld [vmem:[%s1077 + $0x38] sm:$0xff]
          %v1086 = vld [vmem:[%s1077 + $0x40] sm:$0xff]
          %v1087 = vld [vmem:[%s1077 + $0x48] sm:$0xff]
          %v1088 = vld [vmem:[%s1077 + $0x50] sm:$0xff]
          %v1089 = vld [vmem:[%s1077 + $0x58] sm:$0xff]
          %v1090 = vld [vmem:[%s1077 + $0x60] sm:$0xff]
          %v1091 = vld [vmem:[%s1077 + $0x68] sm:$0xff]
          %v1092 = vld [vmem:[%s1077 + $0x70] sm:$0xff]
          %v1093 = vld [vmem:[%s1077 + $0x78] sm:$0xff]
          %v1094 = vld [vmem:[%s4] sm:$0x1]
          %v1096 = vlaneseq
          %v1097 = vshrl.u32 %v1096, 7
          %v1098 = vsub.s32 0, %v1097
          %v1099 = vrot.slane %v1094, %v1098
          %v1101 = vmul.f32 %v1078, %v1099
          %v1102 = vmul.f32 %v1079, %v1099
          %v1103 = vmul.f32 %v1080, %v1099
          %v1104 = vmul.f32 %v1081, %v1099
          %v1105 = vmul.f32 %v1082, %v1099
          %v1106 = vmul.f32 %v1083, %v1099
          %v1107 = vmul.f32 %v1084, %v1099
          %v1108 = vmul.f32 %v1085, %v1099
          %v1109 = vmul.f32 %v1086, %v1099
          %v1110 = vmul.f32 %v1087, %v1099
          %v1111 = vmul.f32 %v1088, %v1099
          %v1112 = vmul.f32 %v1089, %v1099
          %v1113 = vmul.f32 %v1090, %v1099
          %v1114 = vmul.f32 %v1091, %v1099
          %v1115 = vmul.f32 %v1092, %v1099
          %v1116 = vmul.f32 %v1093, %v1099
          %v1117 = vld [vmem:[%s5] sm:$0x1]
          %v1119 = vlaneseq
          %v1120 = vshrl.u32 %v1119, 7
          %v1121 = vsub.s32 0, %v1120
          %v1122 = vrot.slane %v1117, %v1121
          %v1124 = vmul.f32 %v1061, %v1122
          %v1125 = vmul.f32 %v1062, %v1122
          %v1126 = vmul.f32 %v1063, %v1122
          %v1127 = vmul.f32 %v1064, %v1122
          %v1128 = vmul.f32 %v1065, %v1122
          %v1129 = vmul.f32 %v1066, %v1122
          %v1130 = vmul.f32 %v1067, %v1122
          %v1131 = vmul.f32 %v1068, %v1122
          %v1132 = vmul.f32 %v1069, %v1122
          %v1133 = vmul.f32 %v1070, %v1122
          %v1134 = vmul.f32 %v1071, %v1122
          %v1135 = vmul.f32 %v1072, %v1122
          %v1136 = vmul.f32 %v1073, %v1122
          %v1137 = vmul.f32 %v1074, %v1122
          %v1138 = vmul.f32 %v1075, %v1122
          %v1139 = vmul.f32 %v1076, %v1122
          %v1140 = vadd.f32 %v1101, %v1124
          %v1141 = vadd.f32 %v1102, %v1125
          %v1142 = vadd.f32 %v1103, %v1126
          %v1143 = vadd.f32 %v1104, %v1127
          %v1144 = vadd.f32 %v1105, %v1128
          %v1145 = vadd.f32 %v1106, %v1129
          %v1146 = vadd.f32 %v1107, %v1130
          %v1147 = vadd.f32 %v1108, %v1131
          %v1148 = vadd.f32 %v1109, %v1132
          %v1149 = vadd.f32 %v1110, %v1133
          %v1150 = vadd.f32 %v1111, %v1134
          %v1151 = vadd.f32 %v1112, %v1135
          %v1152 = vadd.f32 %v1113, %v1136
          %v1153 = vadd.f32 %v1114, %v1137
          %v1154 = vadd.f32 %v1115, %v1138
          %v1155 = vadd.f32 %v1116, %v1139
          %1156 = vadd.xlane.f32.xlu0 %v1140
          %v1157 = vpop.xlane.xlu0 %1156
          %1158 = vadd.xlane.f32.xlu0 %v1141
          %v1159 = vpop.xlane.xlu0 %1158
          %1160 = vadd.xlane.f32.xlu0 %v1142
          %v1161 = vpop.xlane.xlu0 %1160
          %1162 = vadd.xlane.f32.xlu0 %v1143
          %v1163 = vpop.xlane.xlu0 %1162
          %1164 = vadd.xlane.f32.xlu0 %v1144
          %v1165 = vpop.xlane.xlu0 %1164
          %1166 = vadd.xlane.f32.xlu0 %v1145
          %v1167 = vpop.xlane.xlu0 %1166
          %1168 = vadd.xlane.f32.xlu0 %v1146
          %v1169 = vpop.xlane.xlu0 %1168
          %1170 = vadd.xlane.f32.xlu0 %v1147
          %v1171 = vpop.xlane.xlu0 %1170
          %1172 = vadd.xlane.f32.xlu0 %v1148
          %v1173 = vpop.xlane.xlu0 %1172
          %1174 = vadd.xlane.f32.xlu0 %v1149
          %v1175 = vpop.xlane.xlu0 %1174
          %1176 = vadd.xlane.f32.xlu0 %v1150
          %v1177 = vpop.xlane.xlu0 %1176
          %1178 = vadd.xlane.f32.xlu0 %v1151
          %v1179 = vpop.xlane.xlu0 %1178
          %1180 = vadd.xlane.f32.xlu0 %v1152
          %v1181 = vpop.xlane.xlu0 %1180
          %1182 = vadd.xlane.f32.xlu0 %v1153
          %v1183 = vpop.xlane.xlu0 %1182
          %1184 = vadd.xlane.f32.xlu0 %v1154
          %v1185 = vpop.xlane.xlu0 %1184
          %1186 = vadd.xlane.f32.xlu0 %v1155
          %v1187 = vpop.xlane.xlu0 %1186
          %v1188 = vld [vmem:[#allocation8] sm:$0x1]
          %v1190 = vlaneseq
          %v1191 = vshrl.u32 %v1190, 7
          %v1192 = vsub.s32 0, %v1191
          %v1193 = vrot.slane %v1188, %v1192
          %v1195 = vadd.f32 %v1157, %v1193
          %v1196 = vadd.f32 %v1159, %v1193
          %v1197 = vadd.f32 %v1161, %v1193
          %v1198 = vadd.f32 %v1163, %v1193
          %v1199 = vadd.f32 %v1165, %v1193
          %v1200 = vadd.f32 %v1167, %v1193
          %v1201 = vadd.f32 %v1169, %v1193
          %v1202 = vadd.f32 %v1171, %v1193
          %v1203 = vadd.f32 %v1173, %v1193
          %v1204 = vadd.f32 %v1175, %v1193
          %v1205 = vadd.f32 %v1177, %v1193
          %v1206 = vadd.f32 %v1179, %v1193
          %v1207 = vadd.f32 %v1181, %v1193
          %v1208 = vadd.f32 %v1183, %v1193
          %v1209 = vadd.f32 %v1185, %v1193
          %v1210 = vadd.f32 %v1187, %v1193
          %v1211 = vxor.u32 %v1195, 2147483648
          %v1212 = vxor.u32 %v1196, 2147483648
          %v1213 = vxor.u32 %v1197, 2147483648
          %v1214 = vxor.u32 %v1198, 2147483648
          %v1215 = vxor.u32 %v1199, 2147483648
          %v1216 = vxor.u32 %v1200, 2147483648
          %v1217 = vxor.u32 %v1201, 2147483648
          %v1218 = vxor.u32 %v1202, 2147483648
          %v1219 = vxor.u32 %v1203, 2147483648
          %v1220 = vxor.u32 %v1204, 2147483648
          %v1221 = vxor.u32 %v1205, 2147483648
          %v1222 = vxor.u32 %v1206, 2147483648
          %v1223 = vxor.u32 %v1207, 2147483648
          %v1224 = vxor.u32 %v1208, 2147483648
          %v1225 = vxor.u32 %v1209, 2147483648
          %v1226 = vxor.u32 %v1210, 2147483648
          %v1227 = vmul.f32 %v1211, 1.442695
          %v1228 = vpow.pop %v1227
          %v1229 = vmul.f32 %v1212, 1.442695
          %v1230 = vpow.pop %v1229
          %v1231 = vmul.f32 %v1213, 1.442695
          %v1232 = vpow.pop %v1231
          %v1233 = vmul.f32 %v1214, 1.442695
          %v1234 = vpow.pop %v1233
          %v1235 = vmul.f32 %v1215, 1.442695
          %v1236 = vpow.pop %v1235
          %v1237 = vmul.f32 %v1216, 1.442695
          %v1238 = vpow.pop %v1237
          %v1239 = vmul.f32 %v1217, 1.442695
          %v1240 = vpow.pop %v1239
          %v1241 = vmul.f32 %v1218, 1.442695
          %v1242 = vpow.pop %v1241
          %v1243 = vmul.f32 %v1219, 1.442695
          %v1244 = vpow.pop %v1243
          %v1245 = vmul.f32 %v1220, 1.442695
          %v1246 = vpow.pop %v1245
          %v1247 = vmul.f32 %v1221, 1.442695
          %v1248 = vpow.pop %v1247
          %v1249 = vmul.f32 %v1222, 1.442695
          %v1250 = vpow.pop %v1249
          %v1251 = vmul.f32 %v1223, 1.442695
          %v1252 = vpow.pop %v1251
          %v1253 = vmul.f32 %v1224, 1.442695
          %v1254 = vpow.pop %v1253
          %v1255 = vmul.f32 %v1225, 1.442695
          %v1256 = vpow.pop %v1255
          %v1257 = vmul.f32 %v1226, 1.442695
          %v1258 = vpow.pop %v1257
          %v1259 = vadd.f32 %v1228, 1.0
          %v1260 = vadd.f32 %v1230, 1.0
          %v1261 = vadd.f32 %v1232, 1.0
          %v1262 = vadd.f32 %v1234, 1.0
          %v1263 = vadd.f32 %v1236, 1.0
          %v1264 = vadd.f32 %v1238, 1.0
          %v1265 = vadd.f32 %v1240, 1.0
          %v1266 = vadd.f32 %v1242, 1.0
          %v1267 = vadd.f32 %v1244, 1.0
          %v1268 = vadd.f32 %v1246, 1.0
          %v1269 = vadd.f32 %v1248, 1.0
          %v1270 = vadd.f32 %v1250, 1.0
          %v1271 = vadd.f32 %v1252, 1.0
          %v1272 = vadd.f32 %v1254, 1.0
          %v1273 = vadd.f32 %v1256, 1.0
          %v1274 = vadd.f32 %v1258, 1.0
          %v1275 = vrcp.pop %v1259
          %v1276 = vmul.f32 1.0, %v1275
          %v1277 = vrcp.pop %v1260
          %v1278 = vmul.f32 1.0, %v1277
          %v1279 = vrcp.pop %v1261
          %v1280 = vmul.f32 1.0, %v1279
          %v1281 = vrcp.pop %v1262
          %v1282 = vmul.f32 1.0, %v1281
          %v1283 = vrcp.pop %v1263
          %v1284 = vmul.f32 1.0, %v1283
          %v1285 = vrcp.pop %v1264
          %v1286 = vmul.f32 1.0, %v1285
          %v1287 = vrcp.pop %v1265
          %v1288 = vmul.f32 1.0, %v1287
          %v1289 = vrcp.pop %v1266
          %v1290 = vmul.f32 1.0, %v1289
          %v1291 = vrcp.pop %v1267
          %v1292 = vmul.f32 1.0, %v1291
          %v1293 = vrcp.pop %v1268
          %v1294 = vmul.f32 1.0, %v1293
          %v1295 = vrcp.pop %v1269
          %v1296 = vmul.f32 1.0, %v1295
          %v1297 = vrcp.pop %v1270
          %v1298 = vmul.f32 1.0, %v1297
          %v1299 = vrcp.pop %v1271
          %v1300 = vmul.f32 1.0, %v1299
          %v1301 = vrcp.pop %v1272
          %v1302 = vmul.f32 1.0, %v1301
          %v1303 = vrcp.pop %v1273
          %v1304 = vmul.f32 1.0, %v1303
          %v1305 = vrcp.pop %v1274
          %v1306 = vmul.f32 1.0, %v1305
          %v1307 = vsub.f32 %v1078, %v1061
          %v1308 = vsub.f32 %v1079, %v1062
          %v1309 = vsub.f32 %v1080, %v1063
          %v1310 = vsub.f32 %v1081, %v1064
          %v1311 = vsub.f32 %v1082, %v1065
          %v1312 = vsub.f32 %v1083, %v1066
          %v1313 = vsub.f32 %v1084, %v1067
          %v1314 = vsub.f32 %v1085, %v1068
          %v1315 = vsub.f32 %v1086, %v1069
          %v1316 = vsub.f32 %v1087, %v1070
          %v1317 = vsub.f32 %v1088, %v1071
          %v1318 = vsub.f32 %v1089, %v1072
          %v1319 = vsub.f32 %v1090, %v1073
          %v1320 = vsub.f32 %v1091, %v1074
          %v1321 = vsub.f32 %v1092, %v1075
          %v1322 = vsub.f32 %v1093, %v1076
          %1324 = vset.pattern.permute.xlu0 0
          %1325 = vperm.xlu0 %1324, %v1276
          %v1326 = vpop.permute.xlu0 %1325
          %1329 = vset.pattern.permute.xlu0 0
          %1330 = vperm.xlu0 %1329, %v1278
          %v1331 = vpop.permute.xlu0 %1330
          %1334 = vset.pattern.permute.xlu0 0
          %1335 = vperm.xlu0 %1334, %v1280
          %v1336 = vpop.permute.xlu0 %1335
          %1339 = vset.pattern.permute.xlu0 0
          %1340 = vperm.xlu0 %1339, %v1282
          %v1341 = vpop.permute.xlu0 %1340
          %1344 = vset.pattern.permute.xlu0 0
          %1345 = vperm.xlu0 %1344, %v1284
          %v1346 = vpop.permute.xlu0 %1345
          %1349 = vset.pattern.permute.xlu0 0
          %1350 = vperm.xlu0 %1349, %v1286
          %v1351 = vpop.permute.xlu0 %1350
          %1354 = vset.pattern.permute.xlu0 0
          %1355 = vperm.xlu0 %1354, %v1288
          %v1356 = vpop.permute.xlu0 %1355
          %1359 = vset.pattern.permute.xlu0 0
          %1360 = vperm.xlu0 %1359, %v1290
          %v1361 = vpop.permute.xlu0 %1360
          %1364 = vset.pattern.permute.xlu0 0
          %1365 = vperm.xlu0 %1364, %v1292
          %v1366 = vpop.permute.xlu0 %1365
          %1369 = vset.pattern.permute.xlu0 0
          %1370 = vperm.xlu0 %1369, %v1294
          %v1371 = vpop.permute.xlu0 %1370
          %1374 = vset.pattern.permute.xlu0 0
          %1375 = vperm.xlu0 %1374, %v1296
          %v1376 = vpop.permute.xlu0 %1375
          %1379 = vset.pattern.permute.xlu0 0
          %1380 = vperm.xlu0 %1379, %v1298
          %v1381 = vpop.permute.xlu0 %1380
          %1384 = vset.pattern.permute.xlu0 0
          %1385 = vperm.xlu0 %1384, %v1300
          %v1386 = vpop.permute.xlu0 %1385
          %1389 = vset.pattern.permute.xlu0 0
          %1390 = vperm.xlu0 %1389, %v1302
          %v1391 = vpop.permute.xlu0 %1390
          %1394 = vset.pattern.permute.xlu0 0
          %1395 = vperm.xlu0 %1394, %v1304
          %v1396 = vpop.permute.xlu0 %1395
          %1399 = vset.pattern.permute.xlu0 0
          %1400 = vperm.xlu0 %1399, %v1306
          %v1401 = vpop.permute.xlu0 %1400
          %v1403 = vmul.f32 %v1326, %v1307
          %v1404 = vmul.f32 %v1331, %v1308
          %v1405 = vmul.f32 %v1336, %v1309
          %v1406 = vmul.f32 %v1341, %v1310
          %v1407 = vmul.f32 %v1346, %v1311
          %v1408 = vmul.f32 %v1351, %v1312
          %v1409 = vmul.f32 %v1356, %v1313
          %v1410 = vmul.f32 %v1361, %v1314
          %v1411 = vmul.f32 %v1366, %v1315
          %v1412 = vmul.f32 %v1371, %v1316
          %v1413 = vmul.f32 %v1376, %v1317
          %v1414 = vmul.f32 %v1381, %v1318
          %v1415 = vmul.f32 %v1386, %v1319
          %v1416 = vmul.f32 %v1391, %v1320
          %v1417 = vmul.f32 %v1396, %v1321
          %v1418 = vmul.f32 %v1401, %v1322
          %v1419 = vadd.f32 %v1061, %v1403
          %v1420 = vadd.f32 %v1062, %v1404
          %v1421 = vadd.f32 %v1063, %v1405
          %v1422 = vadd.f32 %v1064, %v1406
          %v1423 = vadd.f32 %v1065, %v1407
          %v1424 = vadd.f32 %v1066, %v1408
          %v1425 = vadd.f32 %v1067, %v1409
          %v1426 = vadd.f32 %v1068, %v1410
          %v1427 = vadd.f32 %v1069, %v1411
          %v1428 = vadd.f32 %v1070, %v1412
          %v1429 = vadd.f32 %v1071, %v1413
          %v1430 = vadd.f32 %v1072, %v1414
          %v1431 = vadd.f32 %v1073, %v1415
          %v1432 = vadd.f32 %v1074, %v1416
          %v1433 = vadd.f32 %v1075, %v1417
          %v1434 = vadd.f32 %v1076, %v1418
          %1435 = vst [vmem:[%s1077] sm:$0xff] %v1419
          %1436 = vst [vmem:[%s1077 + $0x8] sm:$0xff] %v1420
          %1437 = vst [vmem:[%s1077 + $0x10] sm:$0xff] %v1421
          %1438 = vst [vmem:[%s1077 + $0x18] sm:$0xff] %v1422
          %1439 = vst [vmem:[%s1077 + $0x20] sm:$0xff] %v1423
          %1440 = vst [vmem:[%s1077 + $0x28] sm:$0xff] %v1424
          %1441 = vst [vmem:[%s1077 + $0x30] sm:$0xff] %v1425
          %1442 = vst [vmem:[%s1077 + $0x38] sm:$0xff] %v1426
          %1443 = vst [vmem:[%s1077 + $0x40] sm:$0xff] %v1427
          %1444 = vst [vmem:[%s1077 + $0x48] sm:$0xff] %v1428
          %1445 = vst [vmem:[%s1077 + $0x50] sm:$0xff] %v1429
          %1446 = vst [vmem:[%s1077 + $0x58] sm:$0xff] %v1430
          %1447 = vst [vmem:[%s1077 + $0x60] sm:$0xff] %v1431
          %1448 = vst [vmem:[%s1077 + $0x68] sm:$0xff] %v1432
          %1449 = vst [vmem:[%s1077 + $0x70] sm:$0xff] %v1433
          %1450 = vst [vmem:[%s1077 + $0x78] sm:$0xff] %v1434
          %v1451 = vpack.c.bf16 %v1062, %v1061
          %v1452 = vpack.c.bf16 %v1064, %v1063
          %v1453 = vpack.c.bf16 %v1066, %v1065
          %v1454 = vpack.c.bf16 %v1068, %v1067
          %v1455 = vpack.c.bf16 %v1070, %v1069
          %v1456 = vpack.c.bf16 %v1072, %v1071
          %v1457 = vpack.c.bf16 %v1074, %v1073
          %v1458 = vpack.c.bf16 %v1076, %v1075
          %s1459 = smul.addr %s848, 8
          %s1460 = scalar_lea.vmem [#allocation3], %s1459
          %1461 = vst [vmem:[%s1460] sm:$0xff] %v1451
          %1462 = vst [vmem:[%s1460 + $0x8] sm:$0xff] %v1452
          %1463 = vst [vmem:[%s1460 + $0x10] sm:$0xff] %v1453
          %1464 = vst [vmem:[%s1460 + $0x18] sm:$0xff] %v1454
          %1465 = vst [vmem:[%s1460 + $0x20] sm:$0xff] %v1455
          %1466 = vst [vmem:[%s1460 + $0x28] sm:$0xff] %v1456
          %1467 = vst [vmem:[%s1460 + $0x30] sm:$0xff] %v1457
          %1468 = vst [vmem:[%s1460 + $0x38] sm:$0xff] %v1458
          %v1469 = vpack.c.bf16 %v1420, %v1419
          %v1470 = vpack.c.bf16 %v1422, %v1421
          %v1471 = vpack.c.bf16 %v1424, %v1423
          %v1472 = vpack.c.bf16 %v1426, %v1425
          %v1473 = vpack.c.bf16 %v1428, %v1427
          %v1474 = vpack.c.bf16 %v1430, %v1429
          %v1475 = vpack.c.bf16 %v1432, %v1431
          %v1476 = vpack.c.bf16 %v1434, %v1433
          %v1477 = vld [vmem:[#allocation14] sm:$0xf]
          %v1478 = vld [vmem:[#allocation14 + $0x4] sm:$0xf]
          %v1479 = vld [vmem:[#allocation14 + $0x8] sm:$0xf]
          %v1480 = vld [vmem:[#allocation14 + $0xc] sm:$0xf]
          %v1481 = vld [vmem:[#allocation14 + $0x10] sm:$0xf]
          %v1482 = vld [vmem:[#allocation14 + $0x14] sm:$0xf]
          %v1483 = vld [vmem:[#allocation14 + $0x18] sm:$0xf]
          %v1484 = vld [vmem:[#allocation14 + $0x1c] sm:$0xf]
          %v1485 = vld [vmem:[#allocation14 + $0x20] sm:$0xf]
          %v1486 = vld [vmem:[#allocation14 + $0x24] sm:$0xf]
          %v1487 = vld [vmem:[#allocation14 + $0x28] sm:$0xf]
          %v1488 = vld [vmem:[#allocation14 + $0x2c] sm:$0xf]
          %v1489 = vld [vmem:[#allocation14 + $0x30] sm:$0xf]
          %v1490 = vld [vmem:[#allocation14 + $0x34] sm:$0xf]
          %v1491 = vld [vmem:[#allocation14 + $0x38] sm:$0xf]
          %v1492 = vld [vmem:[#allocation14 + $0x3c] sm:$0xf]
          %v1493 = vld [vmem:[%s8] sm:$0x1]
          %v1495 = vlaneseq
          %v1496 = vshrl.u32 %v1495, 7
          %v1497 = vsub.s32 0, %v1496
          %v1498 = vrot.slane %v1493, %v1497
          %v1516 = vunpack.c.l.b16 %v1477
          %v1517 = vunpack.c.l.b16 %v1478
          %v1518 = vunpack.c.l.b16 %v1479
          %v1519 = vunpack.c.l.b16 %v1480
          %v1520 = vunpack.c.l.b16 %v1481
          %v1521 = vunpack.c.l.b16 %v1482
          %v1522 = vunpack.c.l.b16 %v1483
          %v1523 = vunpack.c.l.b16 %v1484
          %v1524 = vunpack.c.l.b16 %v1485
          %v1525 = vunpack.c.l.b16 %v1486
          %v1526 = vunpack.c.l.b16 %v1487
          %v1527 = vunpack.c.l.b16 %v1488
          %v1528 = vunpack.c.l.b16 %v1489
          %v1529 = vunpack.c.l.b16 %v1490
          %v1530 = vunpack.c.l.b16 %v1491
          %v1531 = vunpack.c.l.b16 %v1492
          %v1532 = vpack.c.b16 %v1517, %v1516
          %v1533 = vpack.c.b16 %v1519, %v1518
          %v1534 = vpack.c.b16 %v1521, %v1520
          %v1535 = vpack.c.b16 %v1523, %v1522
          %v1536 = vpack.c.b16 %v1525, %v1524
          %v1537 = vpack.c.b16 %v1527, %v1526
          %v1538 = vpack.c.b16 %v1529, %v1528
          %v1539 = vpack.c.b16 %v1531, %v1530
          %1548 = vmatprep.subr.bf16.mxu0 0
          %1549 = vmatpush1.bf16.msra.mxu0 %v1532
          %1550 = vmatprep.subr.bf16.mxu0 0
          %1551 = vmatpush1.bf16.msra.mxu0 %v1533
          %1552 = vmatprep.subr.bf16.mxu0 0
          %1553 = vmatpush1.bf16.msra.mxu0 %v1534
          %1554 = vmatprep.subr.bf16.mxu0 0
          %1555 = vmatpush1.bf16.msra.mxu0 %v1535
          %1556 = vmatprep.subr.bf16.mxu0 0
          %1557 = vmatpush1.bf16.msra.mxu0 %v1536
          %1558 = vmatprep.subr.bf16.mxu0 0
          %1559 = vmatpush1.bf16.msra.mxu0 %v1537
          %1560 = vmatprep.subr.bf16.mxu0 0
          %1561 = vmatpush1.bf16.msra.mxu0 %v1538
          %1562 = vmatprep.subr.bf16.mxu0 0
          %1563 = vmatpush1.bf16.msra.mxu0 %v1539
          %1564 = vmatprep.subr.bf16.mxu0 0
          %1565 = vmatpush1.bf16.msra.mxu0 0
          %1566 = vmatprep.subr.bf16.mxu0 0
          %1567 = vmatpush1.bf16.msra.mxu0 0
          %1568 = vmatprep.subr.bf16.mxu0 0
          %1569 = vmatpush1.bf16.msra.mxu0 0
          %1570 = vmatprep.subr.bf16.mxu0 0
          %1571 = vmatpush1.bf16.msra.mxu0 0
          %1572 = vmatprep.subr.bf16.mxu0 0
          %1573 = vmatpush1.bf16.msra.mxu0 0
          %1574 = vmatprep.subr.bf16.mxu0 0
          %1575 = vmatpush1.bf16.msra.mxu0 0
          %1576 = vmatprep.subr.bf16.mxu0 0
          %1577 = vmatpush1.bf16.msra.mxu0 0
          %1578 = vmatprep.subr.bf16.mxu0 0
          %1579 = vmatpush1.bf16.msra.mxu0 0
          %1580 = vmatprep.mubr.bf16.mxu0 0
          %1581 = vmatmul.mubr.bf16.gmra.mrb[0].mxu0 %v1469
          %v1582 = vpop.f32.mrb[0].mxu0
          %v1583 = vadd.f32 %v1498, %v1582
          %v1584 = vpop.f32.mrb[0].mxu0
          %v1585 = vpop.f32.mrb[0].mxu0
          %v1586 = vadd.f32 %v1498, %v1585
          %v1587 = vpop.f32.mrb[0].mxu0
          %1588 = vmatprep.mubr.bf16.mxu0 0
          %1589 = vmatmul.mubr.bf16.gmra.mrb[0].mxu0 %v1470
          %v1590 = vpop.f32.mrb[0].mxu0
          %v1591 = vadd.f32 %v1498, %v1590
          %v1592 = vpop.f32.mrb[0].mxu0
          %v1593 = vpop.f32.mrb[0].mxu0
          %v1594 = vadd.f32 %v1498, %v1593
          %v1595 = vpop.f32.mrb[0].mxu0
          %1596 = vmatprep.mubr.bf16.mxu0 0
          %1597 = vmatmul.mubr.bf16.gmra.mrb[0].mxu0 %v1471
          %v1598 = vpop.f32.mrb[0].mxu0
          %v1599 = vadd.f32 %v1498, %v1598
          %v1600 = vpop.f32.mrb[0].mxu0
          %v1601 = vpop.f32.mrb[0].mxu0
          %v1602 = vadd.f32 %v1498, %v1601
          %v1603 = vpop.f32.mrb[0].mxu0
          %1604 = vmatprep.mubr.bf16.mxu0 0
          %1605 = vmatmul.mubr.bf16.gmra.mrb[0].mxu0 %v1472
          %v1606 = vpop.f32.mrb[0].mxu0
          %v1607 = vadd.f32 %v1498, %v1606
          %v1608 = vpop.f32.mrb[0].mxu0
          %v1609 = vpop.f32.mrb[0].mxu0
          %v1610 = vadd.f32 %v1498, %v1609
          %v1611 = vpop.f32.mrb[0].mxu0
          %1612 = vmatprep.mubr.bf16.mxu0 0
          %1613 = vmatmul.mubr.bf16.gmra.mrb[0].mxu0 %v1473
          %v1614 = vpop.f32.mrb[0].mxu0
          %v1615 = vadd.f32 %v1498, %v1614
          %v1616 = vpop.f32.mrb[0].mxu0
          %v1617 = vpop.f32.mrb[0].mxu0
          %v1618 = vadd.f32 %v1498, %v1617
          %v1619 = vpop.f32.mrb[0].mxu0
          %1620 = vmatprep.mubr.bf16.mxu0 0
          %1621 = vmatmul.mubr.bf16.gmra.mrb[0].mxu0 %v1474
          %v1622 = vpop.f32.mrb[0].mxu0
          %v1623 = vadd.f32 %v1498, %v1622
          %v1624 = vpop.f32.mrb[0].mxu0
          %v1625 = vpop.f32.mrb[0].mxu0
          %v1626 = vadd.f32 %v1498, %v1625
          %v1627 = vpop.f32.mrb[0].mxu0
          %1628 = vmatprep.mubr.bf16.mxu0 0
          %1629 = vmatmul.mubr.bf16.gmra.mrb[0].mxu0 %v1475
          %v1630 = vpop.f32.mrb[0].mxu0
          %v1631 = vadd.f32 %v1498, %v1630
          %v1632 = vpop.f32.mrb[0].mxu0
          %v1633 = vpop.f32.mrb[0].mxu0
          %v1634 = vadd.f32 %v1498, %v1633
          %v1635 = vpop.f32.mrb[0].mxu0
          %1636 = vmatprep.mubr.bf16.mxu0 0
          %1637 = vmatmul.mubr.bf16.gmra.mrb[0].mxu0 %v1476
          %v1638 = vpop.f32.mrb[0].mxu0
          %v1639 = vadd.f32 %v1498, %v1638
          %v1640 = vpop.f32.mrb[0].mxu0
          %v1641 = vpop.f32.mrb[0].mxu0
          %v1642 = vadd.f32 %v1498, %v1641
          %v1643 = vpop.f32.mrb[0].mxu0
          %1644 = vdwg.mxu0
          %1645 = vst [vmem:[%s385] sm:$0xff] %v1583
          %1646 = vst [vmem:[%s385 + $0x8] sm:$0xff] %v1586
          %1647 = vst [vmem:[%s385 + $0x10] sm:$0xff] %v1591
          %1648 = vst [vmem:[%s385 + $0x18] sm:$0xff] %v1594
          %1649 = vst [vmem:[%s385 + $0x20] sm:$0xff] %v1599
          %1650 = vst [vmem:[%s385 + $0x28] sm:$0xff] %v1602
          %1651 = vst [vmem:[%s385 + $0x30] sm:$0xff] %v1607
          %1652 = vst [vmem:[%s385 + $0x38] sm:$0xff] %v1610
          %1653 = vst [vmem:[%s385 + $0x40] sm:$0xff] %v1615
          %1654 = vst [vmem:[%s385 + $0x48] sm:$0xff] %v1618
          %1655 = vst [vmem:[%s385 + $0x50] sm:$0xff] %v1623
          %1656 = vst [vmem:[%s385 + $0x58] sm:$0xff] %v1626
          %1657 = vst [vmem:[%s385 + $0x60] sm:$0xff] %v1631
          %1658 = vst [vmem:[%s385 + $0x68] sm:$0xff] %v1634
          %1659 = vst [vmem:[%s385 + $0x70] sm:$0xff] %v1639
          %1660 = vst [vmem:[%s385 + $0x78] sm:$0xff] %v1642
        $region84: #{tpu_custom_call.1} parent=51 // pred_fallthru
          _
        %s1661 = sand.u32 %s234, 1
        %s1662 = scalar_lea.sflag [#allocation11], %s1661
        %s1663 = sand.u32 %s234, 1
        %s1664 = smul.addr %s1663, 128
        %s1665 = scalar_lea.vmem [#allocation15], %s1664
        // Predicated region
        $region85: #{tpu_custom_call.1} parent=51 // pred_check
          %p1666 = pneg %p244
        $region86: #{tpu_custom_call.1} parent=51 // pred_check_branch
          %1668 = sbr.rel (%p1666) target = $region88
        $region87: #{tpu_custom_call.1} parent=51 // pred_region
          %s1669 = smul.u32 16, %s35
          %s1671 = ssub.s32 2048, 2048
          %1672 = vsyncadd %s1662, %s1671
          %s1673 = smul.addr %s1669, 128
          %s1674 = scalar_lea.hbm %s9, %s1673
          %s1675 = sshll.u32 %s1665, 4
          %s1676 = int_to_ptr.vmem [resolvable:$true] %s1675
          %1681 = dma.vmem_to_hbm [thread:$0]  %s1676, 2048, %s1674, %s1662, 128, 128, 8
        $region88: #{tpu_custom_call.1} parent=51 // pred_fallthru
          _
      $region52: #{tpu_custom_call.1} parent=5 // pred_fallthru
        _
      %p1682 = scmp.le.s32.totalorder 2, %s24
      // Predicated region
      $region89: #{tpu_custom_call.1} parent=5 // pred_check
        %p1683 = pneg %p1682
      $region90: #{tpu_custom_call.1} parent=5 // pred_check_branch
        %1685 = sbr.rel (%p1683) target = $region92
      $region91: #{tpu_custom_call.1} parent=5 // pred_region
        %s1686 = ssub.s32 %s24, 2
        // Predicated region
        $region93: #{tpu_custom_call.1} parent=91 // pred_check
          %p1687 = pneg %p250
        $region94: #{tpu_custom_call.1} parent=91 // pred_check_branch
          %1689 = sbr.rel (%p1687) target = $region96
        $region95: #{tpu_custom_call.1} parent=91 // pred_region
          %s1690 = sand.u32 %s235, 1
          %s1691 = scalar_lea.sflag [#allocation11], %s1690
          %s1692 = sand.u32 %s235, 1
          %s1693 = smul.addr %s1692, 128
          %s1694 = scalar_lea.vmem [#allocation15], %s1693
          %1695 = dma.done %s1691, 2048
        $region96: #{tpu_custom_call.1} parent=91 // pred_fallthru
          _
      $region92: #{tpu_custom_call.1} parent=5 // pred_fallthru
        _
    $region6: #{tpu_custom_call.1} parent=1 // loop_footer
      %s28 = sadd.s32 1, %s24
    $region7: #{tpu_custom_call.1} parent=1 // loop_footer_branch
      %23 = sbr.rel target = $region3
    $region8: #{tpu_custom_call.1} parent=1 // loop_exit
      _
    %1696 = vsyncpa [#allocation10], 1
    %s1697 = scalar_lea.sflag [#allocation10], 1
    %1698 = vsyncpa %s1697, 1
    %1699 = vsyncpa [#allocation13], 1
    %s1700 = scalar_lea.sflag [#allocation13], 1
    %1701 = vsyncpa %s1700, 1
    %1702 = vsyncpa [#allocation11], 1
    %s1703 = scalar_lea.sflag [#allocation11], 1
    %1704 = vsyncpa %s1703, 1
  %1705 = vsyncmov [#allocation7]
  %s1706 = vpop.sfrf %1705
  %p1707 = scmp.eq.s32.totalorder %s1706, 0
  %p1708 = pneg %p1707
  %1710 = shalt.err (%p1708)

</llo_original>
